<compile_context>
chip_gen: v6e
topology: v6e:2x2x1
jax: 0.10.0
libtpu: 0.0.40
codegen_flags: <defaults>
</compile_context>

<pallas_src>
import math
import numpy as np
import jax
import jax.numpy as jnp
from jax import lax
from jax.experimental import pallas as pl
from jax.experimental.pallas import tpu as pltpu

# ----- small, module-consistent hyperparameters -----
B = 2            # batch
L = 8            # decoder sequence length
LM = 8           # memory (m / m_tilt) sequence length
E = 48           # embedding_size
H = 32           # hidden_size
HEADS = 4        # num_heads
KD = 32          # total_key_depth
VD = 32          # total_value_depth
F = 64           # filter_size
EPS = 1e-6
NEG_INF = -1e18
QUERY_SCALE = (KD // HEADS) ** -0.5
DH_K = KD // HEADS
DH_V = VD // HEADS
BL = B * L             # rows of the folded decoder activations (16)
BM = B * 2 * LM        # rows of the folded cat(m, m_tilt) memory (32)

# ----- packed constant-slab layout (all row offsets are multiples of 8; lanes padded to 128) -----
R_WEMB = 0                    # (E, H)            rows   0:48
R_TIM = R_WEMB + E            # (BL, H)           rows  48:64   timing signal, pre-tiled over batch
R_WQ = R_TIM + BL             # (H, KD)           rows  64:96   query scale folded in
R_WK = R_WQ + H               # (H, KD)           rows  96:128
R_WV = R_WK + H               # (H, VD)           rows 128:160
R_WO = R_WV + H               # (VD, H)           rows 160:192
R_HMASK = R_WO + VD           # (HEADS*BM, VD)    rows 192:320  0/1 head block mask
R_WC1 = R_HMASK + HEADS * BM  # (4H, F)           rows 320:448  fused conv1 weight, lane-padded
R_WC2 = R_WC1 + 4 * H         # (4F, H)           rows 448:704  fused conv2 weight, lane-padded
R_MISC = R_WC2 + 4 * F        # 8 rows            rows 704:712  g1 b1 g2 b2 g3 b3 bc2 bc1
W_ROWS = R_MISC + 8           # 712


def _gen_timing_signal(length, channels, min_timescale=1.0, max_timescale=1.0e4):
    """Same formula as the PyTorch helper; returns (length, channels) float32."""
    position = np.arange(length)
    num_timescales = channels // 2
    log_timescale_increment = math.log(float(max_timescale) / float(min_timescale)) / (
        float(num_timescales) - 1
    )
    inv_timescales = min_timescale * np.exp(
        np.arange(num_timescales).astype(np.float64) * -log_timescale_increment
    )
    scaled_time = np.expand_dims(position, 1) * np.expand_dims(inv_timescales, 0)
    signal = np.concatenate([np.sin(scaled_time), np.cos(scaled_time)], axis=1)
    signal = np.pad(signal, [[0, 0], [0, channels % 2]], "constant")
    return jnp.asarray(signal, dtype=jnp.float32)


def pack_params(params):
    """Build the single (W_ROWS, 128) f32 constant slab consumed by the kernel.  Called ONCE."""
    slab = np.zeros((W_ROWS, 128), np.float32)

    def put(row, a):
        a = np.asarray(a, np.float32)
        slab[row:row + a.shape[0], :a.shape[1]] = a

    put(R_WEMB, params["wemb"])
    put(R_TIM, np.tile(np.asarray(params["timing"], np.float32), (B, 1)))     # (BL, H)
    put(R_WQ, np.asarray(params["wq"], np.float32) * QUERY_SCALE)             # fold query scale
    put(R_WK, params["wk"])
    put(R_WV, params["wv"])
    put(R_WO, params["wo"])
    # Head block mask: row h*BM + m  <->  lane h*DH + d kept iff same head h (relies on KD == VD).
    put(R_HMASK, (np.arange(HEADS * BM)[:, None] // BM
                  == np.arange(VD)[None, :] // DH_V).astype(np.float32))
    # Fused 3-tap causal-conv weights; contraction zero-padded to 128 / 256 rows (full lanes).
    put(R_WC1, np.asarray(params["wc1"], np.float32).reshape(3 * H, F))
    put(R_WC2, np.asarray(params["wc2"], np.float32).reshape(3 * F, H))
    for i, name in enumerate(["g1", "b1", "g2", "b2", "g3", "b3", "bc2", "bc1"]):
        put(R_MISC + i, params[name])
    return jnp.asarray(slab)


# ----------------------------- Pallas kernel -----------------------------
def decoder_kernel(x_ref, m_ref, bias_ref, w_ref, out_ref):
    f32 = jnp.float32
    x_in = x_ref[...]           # (BL, E)
    m_cat = m_ref[...]          # (BM, H)   cat(m, m_tilt) per batch, batches stacked
    bias = bias_ref[...]        # (BL, HEADS*BM) additive: 0 valid / -1e18 padded or cross-batch

    # ---- carve constants out of the packed slab (static slices, 8-aligned row offsets) ----
    wemb = w_ref[R_WEMB:R_WEMB + E, :H]
    timing = w_ref[R_TIM:R_TIM + BL, :H]
    wq = w_ref[R_WQ:R_WQ + H, :KD]
    wk = w_ref[R_WK:R_WK + H, :KD]
    wv = w_ref[R_WV:R_WV + H, :VD]
    wo = w_ref[R_WO:R_WO + VD, :H]
    hmask = w_ref[R_HMASK:R_HMASK + HEADS * BM, :VD]      # (128, 32) 0/1 head block mask
    wc1 = w_ref[R_WC1:R_WC1 + 4 * H, :F]                  # (128, 64), rows 96:128 are zero
    wc2 = w_ref[R_WC2:R_WC2 + 4 * F, :H]                  # (256, 32), rows 192:256 are zero
    g1 = w_ref[R_MISC + 0:R_MISC + 1, :H]
    b1 = w_ref[R_MISC + 1:R_MISC + 2, :H]
    g2 = w_ref[R_MISC + 2:R_MISC + 3, :H]
    b2 = w_ref[R_MISC + 3:R_MISC + 4, :H]
    g3 = w_ref[R_MISC + 4:R_MISC + 5, :H]
    b3 = w_ref[R_MISC + 5:R_MISC + 6, :H]
    bc2 = w_ref[R_MISC + 6:R_MISC + 7, :H]
    bc1 = w_ref[R_MISC + 7:R_MISC + 8, :F]

    def layer_norm(v, g, b):
        mean = jnp.mean(v, axis=-1, keepdims=True)
        # torch.Tensor.std is unbiased (ddof=1); eps is added to std, not variance.
        var = jnp.sum((v - mean) ** 2, axis=-1, keepdims=True) * (1.0 / (v.shape[-1] - 1))
        inv = pl.reciprocal(jnp.sqrt(var) + EPS)           # exact reciprocal
        return g * (v - mean) * inv + b

    # ---- embedding projection (Linear, no bias) + timing signal ----
    x = jnp.dot(x_in, wemb, preferred_element_type=f32) + timing             # (BL, H)

    # ---- multi-head enc-dec attention: full-width, lane-dense matmuls ----
    x_norm = layer_norm(x, g1, b1)
    q = jnp.dot(x_norm, wq, preferred_element_type=f32)                      # (BL, KD), pre-scaled
    k = jnp.dot(m_cat, wk, preferred_element_type=f32)                       # (BM, KD)
    v = jnp.dot(m_cat, wv, preferred_element_type=f32)                       # (BM, VD)

    # Block-diagonal K / V: row h*BM + m holds memory row m restricted to head h's lanes.  ONE
    # matmul then yields the lane-dense (BL, HEADS*BM) logits with the 4 heads side by side.
    kbd = jnp.concatenate([k] * HEADS, axis=0) * hmask                       # (HEADS*BM, KD)
    vbd = jnp.concatenate([v] * HEADS, axis=0) * hmask                       # (HEADS*BM, VD)

    logits = jnp.einsum("ld,md->lm", q, kbd, preferred_element_type=f32) + bias
    logits = logits - jnp.max(logits, axis=-1, keepdims=True)   # per-row shift (constant per head)
    p = jnp.exp(logits)                                         # masked lanes are exactly 0

    ctx_un = jnp.dot(p, vbd, preferred_element_type=f32)        # (BL, VD), heads already merged
    denom = jnp.dot(p, hmask, preferred_element_type=f32)       # per-head sums, broadcast to lanes
    # NOTE: assumes every query row has >= 1 unmasked key (holds for this module's usage).
    ctx = ctx_un * pl.reciprocal(denom)                         # EXACT softmax normalization
    y = jnp.dot(ctx, wo, preferred_element_type=f32)            # (BL, H)
    x = x + y                                                   # residual (dropout p=0 -> identity)

    # ---- position-wise FFN: fused 3-tap causal convs, contraction padded to full vreg lanes ----
    x_norm2 = layer_norm(x, g2, b2)

    def causal_stack(vv, pad):
        # Rows are batch-major b*L + t; zero-fill where t < shift so batches stay causal.
        t_pos = lax.broadcasted_iota(jnp.int32, vv.shape, 0) % L

        def sh(s):
            return jnp.where(t_pos >= s, pltpu.roll(vv, shift=s, axis=0), f32(0.0))

        # lane blocks: [v[t-2] | v[t-1] | v[t] | zero pad]  (padded conv-weight rows are zero)
        return jnp.concatenate(
            [sh(2), sh(1), vv, jnp.zeros((vv.shape[0], pad), f32)], axis=-1)

    h1 = jnp.maximum(
        jnp.dot(causal_stack(x_norm2, H), wc1, preferred_element_type=f32) + bc1, 0.0)
    # ReLU after the last conv too (matches `if i < len(self.layers)` in the reference FFN)
    h2 = jnp.maximum(
        jnp.dot(causal_stack(h1, F), wc2, preferred_element_type=f32) + bc2, 0.0)
    y2 = x + h2                                                 # residual (dropout p=0 -> identity)

    # ---- final decoder LayerNorm ----
    out_ref[...] = layer_norm(y2, g3, b3).astype(out_ref.dtype)


# ----------------------------- wrapper -----------------------------
@jax.jit
def complex_res_decoder(inputs, m, m_tilt, mask_bool, w_slab):
    """inputs:(B,L,E)  m,m_tilt:(B,LM,H)  mask_bool:(B,1,LM) bool  w_slab:(W_ROWS,128) -> (B,L,H)."""
    f32 = jnp.float32

    x_flat = inputs.reshape(BL, E)
    m_cat = jnp.concatenate([m, m_tilt], axis=1).reshape(BM, H)

    # Additive attention bias (BL, BM): key padding (duplicated for cat(m, m_tilt)) + cross-batch
    # blocking, pre-tiled to the (BL, HEADS*BM) block-diagonal logits layout used by the kernel.
    mask_cat = jnp.concatenate([mask_bool, mask_bool], axis=2)               # (B,1,2LM) bool
    pad_bias = jnp.where(mask_cat[:, 0, :], f32(NEG_INF), f32(0.0)).reshape(BM)
    row_b = jnp.arange(BL) // L
    col_b = jnp.arange(BM) // (2 * LM)
    cross = jnp.where(row_b[:, None] == col_b[None, :], f32(0.0), f32(NEG_INF))
    bias_tiled = jnp.tile(cross + pad_bias[None, :], (1, HEADS))             # (BL, HEADS*BM)

    out = pl.pallas_call(
        decoder_kernel,
        out_shape=jax.ShapeDtypeStruct((BL, H), f32),
        # No grid: single invocation, everything whole-array resident in VMEM (<0.5 MiB).
        in_specs=[pl.BlockSpec(memory_space=pltpu.MemorySpace.VMEM)] * 4,
        out_specs=pl.BlockSpec(memory_space=pltpu.MemorySpace.VMEM),
    )(x_flat, m_cat, bias_tiled, w_slab)
    return out.reshape(B, L, H)


# ----------------------------- pure-JAX reference -----------------------------
def reference(inputs, m, m_tilt, mask_bool, params):
    mask_cat = jnp.concatenate([mask_bool, mask_bool], axis=2)          # (B,1,2LM) bool

    def ln(v, g, b):
        mean = v.mean(-1, keepdims=True)
        var = jnp.sum((v - mean) ** 2, -1, keepdims=True) / (v.shape[-1] - 1)
        return g * (v - mean) / (jnp.sqrt(var) + EPS) + b

    x = inputs @ params["wemb"] + params["timing"][None]
    m_cat = jnp.concatenate([m, m_tilt], axis=1)                        # (B,2LM,H)

    xn = ln(x, params["g1"], params["b1"])
    q = (xn @ params["wq"]) * QUERY_SCALE
    k = m_cat @ params["wk"]
    v = m_cat @ params["wv"]
    qh = q.reshape(B, L, HEADS, DH_K).transpose(0, 2, 1, 3)
    kh = k.reshape(B, 2 * LM, HEADS, DH_K).transpose(0, 2, 1, 3)
    vh = v.reshape(B, 2 * LM, HEADS, DH_V).transpose(0, 2, 1, 3)
    logits = jnp.einsum("bhqd,bhkd->bhqk", qh, kh)
    logits = jnp.where(mask_cat[:, None, :, :], NEG_INF, logits)
    w = jax.nn.softmax(logits, axis=-1)
    ctx = jnp.einsum("bhqk,bhkd->bhqd", w, vh).transpose(0, 2, 1, 3).reshape(B, L, VD)
    y = ctx @ params["wo"]
    x = x + y

    xn2 = ln(x, params["g2"], params["b2"])

    def cconv(v, w3, bias):
        acc = jnp.zeros(v.shape[:-1] + (w3.shape[-1],), jnp.float32)
        for tap in range(3):
            s = 2 - tap
            vs = jnp.pad(v, ((0, 0), (s, 0), (0, 0)))[:, : v.shape[1], :]
            acc = acc + vs @ w3[tap]
        return acc + bias

    h1 = jax.nn.relu(cconv(xn2, params["wc1"], params["bc1"]))
    h2 = jax.nn.relu(cconv(h1, params["wc2"], params["bc2"]))
    y2 = x + h2
    return ln(y2, params["g3"], params["b3"])


# ----------------------------- main -----------------------------
if __name__ == "__main__":
    key = jax.random.PRNGKey(0)
    ks = jax.random.split(key, 16)

    inputs = jax.random.normal(ks[0], (B, L, E), jnp.float32)
    m = jax.random.normal(ks[1], (B, LM, H), jnp.float32)
    m_tilt = jax.random.normal(ks[2], (B, LM, H), jnp.float32)
    # key-padding mask: last positions of the memory are padded (True = masked)
    pos = jnp.arange(LM)[None, None, :]
    valid_len = jnp.array([LM - 2, LM - 1])[:, None, None]
    mask_bool = pos >= valid_len                                       # (B,1,LM) bool

    s = 0.1
    params = {
        "wemb": s * jax.random.normal(ks[3], (E, H), jnp.float32),     # Linear(E,H,bias=False)
        "timing": _gen_timing_signal(L, H),                            # timing_signal[:, :L, :]
        "g1": jnp.ones((1, H), jnp.float32), "b1": jnp.zeros((1, H), jnp.float32),
        "wq": s * jax.random.normal(ks[4], (H, KD), jnp.float32),
        "wk": s * jax.random.normal(ks[5], (H, KD), jnp.float32),
        "wv": s * jax.random.normal(ks[6], (H, VD), jnp.float32),
        "wo": s * jax.random.normal(ks[7], (VD, H), jnp.float32),
        "g2": jnp.ones((1, H), jnp.float32), "b2": jnp.zeros((1, H), jnp.float32),
        "wc1": s * jax.random.normal(ks[8], (3, H, F), jnp.float32),   # Conv1d(H,F,3) taps
        "bc1": s * jax.random.normal(ks[9], (1, F), jnp.float32),
        "wc2": s * jax.random.normal(ks[10], (3, F, H), jnp.float32),  # Conv1d(F,H,3) taps
        "bc2": s * jax.random.normal(ks[11], (1, H), jnp.float32),
        "g3": jnp.ones((1, H), jnp.float32), "b3": jnp.zeros((1, H), jnp.float32),
    }

    w_slab = pack_params(params)    # one-time packed constant slab (hoisted out of the call path)

    out = jax.block_until_ready(complex_res_decoder(inputs, m, m_tilt, mask_bool, w_slab))
    ref = jax.block_until_ready(reference(inputs, m, m_tilt, mask_bool, params))

    np.testing.assert_allclose(np.asarray(out), np.asarray(ref), rtol=2e-4, atol=2e-4)
    # TODO(synk): dropout layers (p=0.0, identity at inference) and the unused attention-weight
    # output of MultiHeadAttention are omitted.
    print("KERNEL_OK")
</pallas_src>

<mosaic_0001>
module attributes {stable_mosaic.version = 11 : i64} {
  func.func @decoder_kernel(%arg0: memref<16x48xf32, #tpu.memory_space<vmem>>, %arg1: memref<32x32xf32, #tpu.memory_space<vmem>>, %arg2: memref<16x128xf32, #tpu.memory_space<vmem>>, %arg3: memref<712x128xf32, #tpu.memory_space<vmem>>, %arg4: memref<16x32xf32, #tpu.memory_space<vmem>>) attributes {dimension_semantics = [], scalar_prefetch = 0 : i64, scratch_operands = 0 : i64, tpu.core_type = #tpu.core_type<tc>} {
    %c0 = arith.constant 0 : index
    %c0_0 = arith.constant 0 : index
    %0 = vector.load %arg0[%c0, %c0_0] : memref<16x48xf32, #tpu.memory_space<vmem>>, vector<16x48xf32>
    %c0_1 = arith.constant 0 : index
    %c0_2 = arith.constant 0 : index
    %1 = vector.load %arg1[%c0_1, %c0_2] : memref<32x32xf32, #tpu.memory_space<vmem>>, vector<32x32xf32>
    %c0_3 = arith.constant 0 : index
    %c0_4 = arith.constant 0 : index
    %2 = vector.load %arg2[%c0_3, %c0_4] : memref<16x128xf32, #tpu.memory_space<vmem>>, vector<16x128xf32>
    %c0_5 = arith.constant 0 : index
    %c0_6 = arith.constant 0 : index
    %3 = vector.load %arg3[%c0_5, %c0_6] : memref<712x128xf32, #tpu.memory_space<vmem>>, vector<48x32xf32>
    %c48 = arith.constant 48 : index
    %c0_7 = arith.constant 0 : index
    %4 = vector.load %arg3[%c48, %c0_7] : memref<712x128xf32, #tpu.memory_space<vmem>>, vector<16x32xf32>
    %c64 = arith.constant 64 : index
    %c0_8 = arith.constant 0 : index
    %5 = vector.load %arg3[%c64, %c0_8] : memref<712x128xf32, #tpu.memory_space<vmem>>, vector<32x32xf32>
    %c96 = arith.constant 96 : index
    %c0_9 = arith.constant 0 : index
    %6 = vector.load %arg3[%c96, %c0_9] : memref<712x128xf32, #tpu.memory_space<vmem>>, vector<32x32xf32>
    %c128 = arith.constant 128 : index
    %c0_10 = arith.constant 0 : index
    %7 = vector.load %arg3[%c128, %c0_10] : memref<712x128xf32, #tpu.memory_space<vmem>>, vector<32x32xf32>
    %c160 = arith.constant 160 : index
    %c0_11 = arith.constant 0 : index
    %8 = vector.load %arg3[%c160, %c0_11] : memref<712x128xf32, #tpu.memory_space<vmem>>, vector<32x32xf32>
    %c192 = arith.constant 192 : index
    %c0_12 = arith.constant 0 : index
    %9 = vector.load %arg3[%c192, %c0_12] : memref<712x128xf32, #tpu.memory_space<vmem>>, vector<128x32xf32>
    %c320 = arith.constant 320 : index
    %c0_13 = arith.constant 0 : index
    %10 = vector.load %arg3[%c320, %c0_13] : memref<712x128xf32, #tpu.memory_space<vmem>>, vector<128x64xf32>
    %c448 = arith.constant 448 : index
    %c0_14 = arith.constant 0 : index
    %11 = vector.load %arg3[%c448, %c0_14] : memref<712x128xf32, #tpu.memory_space<vmem>>, vector<256x32xf32>
    %c704 = arith.constant 704 : index
    %c0_15 = arith.constant 0 : index
    %12 = vector.load %arg3[%c704, %c0_15] : memref<712x128xf32, #tpu.memory_space<vmem>>, vector<1x32xf32>
    %c705 = arith.constant 705 : index
    %c0_16 = arith.constant 0 : index
    %13 = vector.load %arg3[%c705, %c0_16] : memref<712x128xf32, #tpu.memory_space<vmem>>, vector<1x32xf32>
    %c706 = arith.constant 706 : index
    %c0_17 = arith.constant 0 : index
    %14 = vector.load %arg3[%c706, %c0_17] : memref<712x128xf32, #tpu.memory_space<vmem>>, vector<1x32xf32>
    %c707 = arith.constant 707 : index
    %c0_18 = arith.constant 0 : index
    %15 = vector.load %arg3[%c707, %c0_18] : memref<712x128xf32, #tpu.memory_space<vmem>>, vector<1x32xf32>
    %c708 = arith.constant 708 : index
    %c0_19 = arith.constant 0 : index
    %16 = vector.load %arg3[%c708, %c0_19] : memref<712x128xf32, #tpu.memory_space<vmem>>, vector<1x32xf32>
    %c709 = arith.constant 709 : index
    %c0_20 = arith.constant 0 : index
    %17 = vector.load %arg3[%c709, %c0_20] : memref<712x128xf32, #tpu.memory_space<vmem>>, vector<1x32xf32>
    %c710 = arith.constant 710 : index
    %c0_21 = arith.constant 0 : index
    %18 = vector.load %arg3[%c710, %c0_21] : memref<712x128xf32, #tpu.memory_space<vmem>>, vector<1x32xf32>
    %c711 = arith.constant 711 : index
    %c0_22 = arith.constant 0 : index
    %19 = vector.load %arg3[%c711, %c0_22] : memref<712x128xf32, #tpu.memory_space<vmem>>, vector<1x64xf32>
    %cst = arith.constant dense<0.000000e+00> : vector<16x32xf32>
    %20 = tpu.matmul %0, %3, %cst {dimension_numbers = #tpu.dot_dimension_numbers<[1], [0], [0], [1], [0, 0, 1, 1], [], []>} : vector<16x48xf32>, vector<48x32xf32>, vector<16x32xf32> -> vector<16x32xf32>
    %21 = arith.addf %20, %4 : vector<16x32xf32>
    %cst_23 = arith.constant dense<0.000000e+00> : vector<16xf32>
    %22 = vector.multi_reduction <add>, %21, %cst_23 [1] : vector<16x32xf32> to vector<16xf32>
    %23 = vector.shape_cast %22 : vector<16xf32> to vector<16x1xf32>
    %cst_24 = arith.constant 3.200000e+01 : f32
    %24 = vector.broadcast %cst_24 : f32 to vector<16x1xf32>
    %25 = arith.divf %23, %24 : vector<16x1xf32>
    %26 = vector.broadcast %25 : vector<16x1xf32> to vector<16x32xf32>
    %27 = arith.subf %21, %26 : vector<16x32xf32>
    %28 = arith.mulf %27, %27 : vector<16x32xf32>
    %cst_25 = arith.constant dense<0.000000e+00> : vector<16xf32>
    %29 = vector.multi_reduction <add>, %28, %cst_25 [1] : vector<16x32xf32> to vector<16xf32>
    %30 = vector.shape_cast %29 : vector<16xf32> to vector<16x1xf32>
    %cst_26 = arith.constant 0.0322580636 : f32
    %31 = vector.broadcast %cst_26 : f32 to vector<16x1xf32>
    %32 = arith.mulf %30, %31 : vector<16x1xf32>
    %33 = math.sqrt %32 : vector<16x1xf32>
    %cst_27 = arith.constant 9.99999997E-7 : f32
    %34 = vector.broadcast %cst_27 : f32 to vector<16x1xf32>
    %35 = arith.addf %33, %34 : vector<16x1xf32>
    %36 = tpu.reciprocal %35 : vector<16x1xf32> -> vector<16x1xf32>
    %37 = vector.broadcast %25 : vector<16x1xf32> to vector<16x32xf32>
    %38 = arith.subf %21, %37 : vector<16x32xf32>
    %39 = vector.broadcast %12 : vector<1x32xf32> to vector<16x32xf32>
    %40 = arith.mulf %39, %38 : vector<16x32xf32>
    %41 = vector.broadcast %36 : vector<16x1xf32> to vector<16x32xf32>
    %42 = arith.mulf %40, %41 : vector<16x32xf32>
    %43 = vector.broadcast %13 : vector<1x32xf32> to vector<16x32xf32>
    %44 = arith.addf %42, %43 : vector<16x32xf32>
    %cst_28 = arith.constant dense<0.000000e+00> : vector<16x32xf32>
    %45 = tpu.matmul %44, %5, %cst_28 {dimension_numbers = #tpu.dot_dimension_numbers<[1], [0], [0], [1], [0, 0, 1, 1], [], []>} : vector<16x32xf32>, vector<32x32xf32>, vector<16x32xf32> -> vector<16x32xf32>
    %cst_29 = arith.constant dense<0.000000e+00> : vector<32x32xf32>
    %46 = tpu.matmul %1, %6, %cst_29 {dimension_numbers = #tpu.dot_dimension_numbers<[1], [0], [0], [1], [0, 0, 1, 1], [], []>} : vector<32x32xf32>, vector<32x32xf32>, vector<32x32xf32> -> vector<32x32xf32>
    %cst_30 = arith.constant dense<0.000000e+00> : vector<32x32xf32>
    %47 = tpu.matmul %1, %7, %cst_30 {dimension_numbers = #tpu.dot_dimension_numbers<[1], [0], [0], [1], [0, 0, 1, 1], [], []>} : vector<32x32xf32>, vector<32x32xf32>, vector<32x32xf32> -> vector<32x32xf32>
    %48 = tpu.concatenate %46, %46, %46, %46 in 0 : vector<32x32xf32>, vector<32x32xf32>, vector<32x32xf32>, vector<32x32xf32> -> vector<128x32xf32>
    %49 = arith.mulf %48, %9 : vector<128x32xf32>
    %50 = tpu.concatenate %47, %47, %47, %47 in 0 : vector<32x32xf32>, vector<32x32xf32>, vector<32x32xf32>, vector<32x32xf32> -> vector<128x32xf32>
    %51 = arith.mulf %50, %9 : vector<128x32xf32>
    "tpu.trace_start"() <{level = 10 : i32, message = "ld,md->lm"}> : () -> ()
    %cst_31 = arith.constant dense<0.000000e+00> : vector<16x128xf32>
    %52 = tpu.matmul %45, %49, %cst_31 {dimension_numbers = #tpu.dot_dimension_numbers<[1], [1], [0], [0], [0, 0, 1, 0], [], []>} : vector<16x32xf32>, vector<128x32xf32>, vector<16x128xf32> -> vector<16x128xf32>
    "tpu.trace_stop"() : () -> ()
    %53 = arith.addf %52, %2 : vector<16x128xf32>
    %cst_32 = arith.constant dense<0xFF800000> : vector<16xf32>
    %54 = vector.multi_reduction <maximumf>, %53, %cst_32 [1] : vector<16x128xf32> to vector<16xf32>
    %55 = vector.shape_cast %54 : vector<16xf32> to vector<16x1xf32>
    %56 = vector.broadcast %55 : vector<16x1xf32> to vector<16x128xf32>
    %57 = arith.subf %53, %56 : vector<16x128xf32>
    %58 = math.exp %57 : vector<16x128xf32>
    %cst_33 = arith.constant dense<0.000000e+00> : vector<16x32xf32>
    %59 = tpu.matmul %58, %51, %cst_33 {dimension_numbers = #tpu.dot_dimension_numbers<[1], [0], [0], [1], [0, 0, 1, 1], [], []>} : vector<16x128xf32>, vector<128x32xf32>, vector<16x32xf32> -> vector<16x32xf32>
    %cst_34 = arith.constant dense<0.000000e+00> : vector<16x32xf32>
    %60 = tpu.matmul %58, %9, %cst_34 {dimension_numbers = #tpu.dot_dimension_numbers<[1], [0], [0], [1], [0, 0, 1, 1], [], []>} : vector<16x128xf32>, vector<128x32xf32>, vector<16x32xf32> -> vector<16x32xf32>
    %61 = tpu.reciprocal %60 : vector<16x32xf32> -> vector<16x32xf32>
    %62 = arith.mulf %59, %61 : vector<16x32xf32>
    %cst_35 = arith.constant dense<0.000000e+00> : vector<16x32xf32>
    %63 = tpu.matmul %62, %8, %cst_35 {dimension_numbers = #tpu.dot_dimension_numbers<[1], [0], [0], [1], [0, 0, 1, 1], [], []>} : vector<16x32xf32>, vector<32x32xf32>, vector<16x32xf32> -> vector<16x32xf32>
    %64 = arith.addf %21, %63 : vector<16x32xf32>
    %cst_36 = arith.constant dense<0.000000e+00> : vector<16xf32>
    %65 = vector.multi_reduction <add>, %64, %cst_36 [1] : vector<16x32xf32> to vector<16xf32>
    %66 = vector.shape_cast %65 : vector<16xf32> to vector<16x1xf32>
    %cst_37 = arith.constant 3.200000e+01 : f32
    %67 = vector.broadcast %cst_37 : f32 to vector<16x1xf32>
    %68 = arith.divf %66, %67 : vector<16x1xf32>
    %69 = vector.broadcast %68 : vector<16x1xf32> to vector<16x32xf32>
    %70 = arith.subf %64, %69 : vector<16x32xf32>
    %71 = arith.mulf %70, %70 : vector<16x32xf32>
    %cst_38 = arith.constant dense<0.000000e+00> : vector<16xf32>
    %72 = vector.multi_reduction <add>, %71, %cst_38 [1] : vector<16x32xf32> to vector<16xf32>
    %73 = vector.shape_cast %72 : vector<16xf32> to vector<16x1xf32>
    %cst_39 = arith.constant 0.0322580636 : f32
    %74 = vector.broadcast %cst_39 : f32 to vector<16x1xf32>
    %75 = arith.mulf %73, %74 : vector<16x1xf32>
    %76 = math.sqrt %75 : vector<16x1xf32>
    %cst_40 = arith.constant 9.99999997E-7 : f32
    %77 = vector.broadcast %cst_40 : f32 to vector<16x1xf32>
    %78 = arith.addf %76, %77 : vector<16x1xf32>
    %79 = tpu.reciprocal %78 : vector<16x1xf32> -> vector<16x1xf32>
    %80 = vector.broadcast %68 : vector<16x1xf32> to vector<16x32xf32>
    %81 = arith.subf %64, %80 : vector<16x32xf32>
    %82 = vector.broadcast %14 : vector<1x32xf32> to vector<16x32xf32>
    %83 = arith.mulf %82, %81 : vector<16x32xf32>
    %84 = vector.broadcast %79 : vector<16x1xf32> to vector<16x32xf32>
    %85 = arith.mulf %83, %84 : vector<16x32xf32>
    %86 = vector.broadcast %15 : vector<1x32xf32> to vector<16x32xf32>
    %87 = arith.addf %85, %86 : vector<16x32xf32>
    %88 = tpu.iota {dimensions = array<i32: 0>} : vector<16x32xi32>
    %c8_i32 = arith.constant 8 : i32
    %c0_i32 = arith.constant 0 : i32
    %89 = arith.cmpi eq, %c8_i32, %c0_i32 : i32
    %c1_i32 = arith.constant 1 : i32
    %90 = arith.select %89, %c1_i32, %c8_i32 : i32
    %91 = vector.broadcast %90 : i32 to vector<16x32xi32>
    %92 = arith.remsi %88, %91 : vector<16x32xi32>
    %c0_i32_41 = arith.constant 0 : i32
    %93 = vector.broadcast %c0_i32_41 : i32 to vector<16x32xi32>
    %94 = arith.cmpi ne, %92, %93 : vector<16x32xi32>
    %c0_i32_42 = arith.constant 0 : i32
    %95 = vector.broadcast %c0_i32_42 : i32 to vector<16x32xi32>
    %96 = arith.cmpi slt, %92, %95 : vector<16x32xi32>
    %c0_i32_43 = arith.constant 0 : i32
    %97 = arith.cmpi slt, %90, %c0_i32_43 : i32
    %98 = vector.broadcast %97 : i1 to vector<16x32xi1>
    %99 = vector.broadcast %98 : vector<16x32xi1> to vector<16x32xi1>
    %100 = arith.xori %96, %99 : vector<16x32xi1>
    %101 = arith.andi %100, %94 : vector<16x32xi1>
    %102 = vector.broadcast %90 : i32 to vector<16x32xi32>
    %103 = arith.addi %92, %102 : vector<16x32xi32>
    %104 = arith.select %101, %103, %92 : vector<16x32xi1>, vector<16x32xi32>
    %c2_i32 = arith.constant 2 : i32
    %105 = vector.broadcast %c2_i32 : i32 to vector<16x32xi32>
    %106 = arith.cmpi sge, %104, %105 : vector<16x32xi32>
    %c2_i32_44 = arith.constant 2 : i32
    %107 = tpu.dynamic_rotate %87 by %c2_i32_44 dim 0 : vector<16x32xf32>, i32 -> vector<16x32xf32>
    %cst_45 = arith.constant 0.000000e+00 : f32
    %108 = vector.broadcast %cst_45 : f32 to vector<16x32xf32>
    %109 = arith.select %106, %107, %108 : vector<16x32xi1>, vector<16x32xf32>
    %c1_i32_46 = arith.constant 1 : i32
    %110 = vector.broadcast %c1_i32_46 : i32 to vector<16x32xi32>
    %111 = arith.cmpi sge, %104, %110 : vector<16x32xi32>
    %c1_i32_47 = arith.constant 1 : i32
    %112 = tpu.dynamic_rotate %87 by %c1_i32_47 dim 0 : vector<16x32xf32>, i32 -> vector<16x32xf32>
    %cst_48 = arith.constant 0.000000e+00 : f32
    %113 = vector.broadcast %cst_48 : f32 to vector<16x32xf32>
    %114 = arith.select %111, %112, %113 : vector<16x32xi1>, vector<16x32xf32>
    %cst_49 = arith.constant 0.000000e+00 : f32
    %115 = vector.broadcast %cst_49 : f32 to vector<16x32xf32>
    %116 = tpu.concatenate %109, %114, %87, %115 in 1 : vector<16x32xf32>, vector<16x32xf32>, vector<16x32xf32>, vector<16x32xf32> -> vector<16x128xf32>
    %cst_50 = arith.constant dense<0.000000e+00> : vector<16x64xf32>
    %117 = tpu.matmul %116, %10, %cst_50 {dimension_numbers = #tpu.dot_dimension_numbers<[1], [0], [0], [1], [0, 0, 1, 1], [], []>} : vector<16x128xf32>, vector<128x64xf32>, vector<16x64xf32> -> vector<16x64xf32>
    %118 = vector.broadcast %19 : vector<1x64xf32> to vector<16x64xf32>
    %119 = arith.addf %117, %118 : vector<16x64xf32>
    %cst_51 = arith.constant 0.000000e+00 : f32
    %120 = vector.broadcast %cst_51 : f32 to vector<16x64xf32>
    %121 = arith.maximumf %119, %120 : vector<16x64xf32>
    %122 = tpu.iota {dimensions = array<i32: 0>} : vector<16x64xi32>
    %c8_i32_52 = arith.constant 8 : i32
    %c0_i32_53 = arith.constant 0 : i32
    %123 = arith.cmpi eq, %c8_i32_52, %c0_i32_53 : i32
    %c1_i32_54 = arith.constant 1 : i32
    %124 = arith.select %123, %c1_i32_54, %c8_i32_52 : i32
    %125 = vector.broadcast %124 : i32 to vector<16x64xi32>
    %126 = arith.remsi %122, %125 : vector<16x64xi32>
    %c0_i32_55 = arith.constant 0 : i32
    %127 = vector.broadcast %c0_i32_55 : i32 to vector<16x64xi32>
    %128 = arith.cmpi ne, %126, %127 : vector<16x64xi32>
    %c0_i32_56 = arith.constant 0 : i32
    %129 = vector.broadcast %c0_i32_56 : i32 to vector<16x64xi32>
    %130 = arith.cmpi slt, %126, %129 : vector<16x64xi32>
    %c0_i32_57 = arith.constant 0 : i32
    %131 = arith.cmpi slt, %124, %c0_i32_57 : i32
    %132 = vector.broadcast %131 : i1 to vector<16x64xi1>
    %133 = vector.broadcast %132 : vector<16x64xi1> to vector<16x64xi1>
    %134 = arith.xori %130, %133 : vector<16x64xi1>
    %135 = arith.andi %134, %128 : vector<16x64xi1>
    %136 = vector.broadcast %124 : i32 to vector<16x64xi32>
    %137 = arith.addi %126, %136 : vector<16x64xi32>
    %138 = arith.select %135, %137, %126 : vector<16x64xi1>, vector<16x64xi32>
    %c2_i32_58 = arith.constant 2 : i32
    %139 = vector.broadcast %c2_i32_58 : i32 to vector<16x64xi32>
    %140 = arith.cmpi sge, %138, %139 : vector<16x64xi32>
    %c2_i32_59 = arith.constant 2 : i32
    %141 = tpu.dynamic_rotate %121 by %c2_i32_59 dim 0 : vector<16x64xf32>, i32 -> vector<16x64xf32>
    %cst_60 = arith.constant 0.000000e+00 : f32
    %142 = vector.broadcast %cst_60 : f32 to vector<16x64xf32>
    %143 = arith.select %140, %141, %142 : vector<16x64xi1>, vector<16x64xf32>
    %c1_i32_61 = arith.constant 1 : i32
    %144 = vector.broadcast %c1_i32_61 : i32 to vector<16x64xi32>
    %145 = arith.cmpi sge, %138, %144 : vector<16x64xi32>
    %c1_i32_62 = arith.constant 1 : i32
    %146 = tpu.dynamic_rotate %121 by %c1_i32_62 dim 0 : vector<16x64xf32>, i32 -> vector<16x64xf32>
    %cst_63 = arith.constant 0.000000e+00 : f32
    %147 = vector.broadcast %cst_63 : f32 to vector<16x64xf32>
    %148 = arith.select %145, %146, %147 : vector<16x64xi1>, vector<16x64xf32>
    %cst_64 = arith.constant 0.000000e+00 : f32
    %149 = vector.broadcast %cst_64 : f32 to vector<16x64xf32>
    %150 = tpu.concatenate %143, %148, %121, %149 in 1 : vector<16x64xf32>, vector<16x64xf32>, vector<16x64xf32>, vector<16x64xf32> -> vector<16x256xf32>
    %cst_65 = arith.constant dense<0.000000e+00> : vector<16x32xf32>
    %151 = tpu.matmul %150, %11, %cst_65 {dimension_numbers = #tpu.dot_dimension_numbers<[1], [0], [0], [1], [0, 0, 1, 1], [], []>} : vector<16x256xf32>, vector<256x32xf32>, vector<16x32xf32> -> vector<16x32xf32>
    %152 = vector.broadcast %18 : vector<1x32xf32> to vector<16x32xf32>
    %153 = arith.addf %151, %152 : vector<16x32xf32>
    %cst_66 = arith.constant 0.000000e+00 : f32
    %154 = vector.broadcast %cst_66 : f32 to vector<16x32xf32>
    %155 = arith.maximumf %153, %154 : vector<16x32xf32>
    %156 = arith.addf %64, %155 : vector<16x32xf32>
    %cst_67 = arith.constant dense<0.000000e+00> : vector<16xf32>
    %157 = vector.multi_reduction <add>, %156, %cst_67 [1] : vector<16x32xf32> to vector<16xf32>
    %158 = vector.shape_cast %157 : vector<16xf32> to vector<16x1xf32>
    %cst_68 = arith.constant 3.200000e+01 : f32
    %159 = vector.broadcast %cst_68 : f32 to vector<16x1xf32>
    %160 = arith.divf %158, %159 : vector<16x1xf32>
    %161 = vector.broadcast %160 : vector<16x1xf32> to vector<16x32xf32>
    %162 = arith.subf %156, %161 : vector<16x32xf32>
    %163 = arith.mulf %162, %162 : vector<16x32xf32>
    %cst_69 = arith.constant dense<0.000000e+00> : vector<16xf32>
    %164 = vector.multi_reduction <add>, %163, %cst_69 [1] : vector<16x32xf32> to vector<16xf32>
    %165 = vector.shape_cast %164 : vector<16xf32> to vector<16x1xf32>
    %cst_70 = arith.constant 0.0322580636 : f32
    %166 = vector.broadcast %cst_70 : f32 to vector<16x1xf32>
    %167 = arith.mulf %165, %166 : vector<16x1xf32>
    %168 = math.sqrt %167 : vector<16x1xf32>
    %cst_71 = arith.constant 9.99999997E-7 : f32
    %169 = vector.broadcast %cst_71 : f32 to vector<16x1xf32>
    %170 = arith.addf %168, %169 : vector<16x1xf32>
    %171 = tpu.reciprocal %170 : vector<16x1xf32> -> vector<16x1xf32>
    %172 = vector.broadcast %160 : vector<16x1xf32> to vector<16x32xf32>
    %173 = arith.subf %156, %172 : vector<16x32xf32>
    %174 = vector.broadcast %16 : vector<1x32xf32> to vector<16x32xf32>
    %175 = arith.mulf %174, %173 : vector<16x32xf32>
    %176 = vector.broadcast %171 : vector<16x1xf32> to vector<16x32xf32>
    %177 = arith.mulf %175, %176 : vector<16x32xf32>
    %178 = vector.broadcast %17 : vector<1x32xf32> to vector<16x32xf32>
    %179 = arith.addf %177, %178 : vector<16x32xf32>
    %c0_72 = arith.constant 0 : index
    %c0_73 = arith.constant 0 : index
    %180 = vector.load %arg4[%c0_72, %c0_73] : memref<16x32xf32, #tpu.memory_space<vmem>>, vector<16x32xf32>
    tpu.vector_store %arg4[%c0_72, %c0_73], %179 {strides = array<i32>} : memref<16x32xf32, #tpu.memory_space<vmem>>, vector<16x32xf32>,
    return
  }
}

</mosaic_0001>

<llo_original>
// kernel: tile.9
$region0: #{tile.9}
  %s0 = inlined_call_operand.vmem [shape: f32[16,4,32], index: 0, kind: input, shape index: {}]
  %s1 = inlined_call_operand.vmem [shape: f32[16,128], index: 1, kind: output, shape index: {}]
  $region1: #{tile.9} parent=0
    #allocation0 [shape = 'u8[65536]{0}', space=vmem, size = 0x10000, scoped, tag = 'scoped mem for input reshape']
    %s3 = sshll.u32 1, 4
    %s4 = ssub.s32 %s3, 1
    %s5 = smul.addr 4, 15
    %s6 = scalar_lea.vmem %s0, %s5
    %v7 = vld [vmem:[%s6] sm:%s4]
    %s8 = scalar_lea.vmem [#allocation0], 120
    %9 = vst [vmem:[%s8] sm:%s4] %v7
    %s10 = smul.addr 4, 14
    %s11 = scalar_lea.vmem %s0, %s10
    %v12 = vld [vmem:[%s11] sm:%s4]
    %s13 = scalar_lea.vmem [#allocation0], 112
    %14 = vst [vmem:[%s13] sm:%s4] %v12
    %s15 = smul.addr 4, 13
    %s16 = scalar_lea.vmem %s0, %s15
    %v17 = vld [vmem:[%s16] sm:%s4]
    %s18 = scalar_lea.vmem [#allocation0], 104
    %19 = vst [vmem:[%s18] sm:%s4] %v17
    %s20 = smul.addr 4, 12
    %s21 = scalar_lea.vmem %s0, %s20
    %v22 = vld [vmem:[%s21] sm:%s4]
    %s23 = scalar_lea.vmem [#allocation0], 96
    %24 = vst [vmem:[%s23] sm:%s4] %v22
    %s25 = smul.addr 4, 11
    %s26 = scalar_lea.vmem %s0, %s25
    %v27 = vld [vmem:[%s26] sm:%s4]
    %s28 = scalar_lea.vmem [#allocation0], 88
    %29 = vst [vmem:[%s28] sm:%s4] %v27
    %s30 = smul.addr 4, 10
    %s31 = scalar_lea.vmem %s0, %s30
    %v32 = vld [vmem:[%s31] sm:%s4]
    %s33 = scalar_lea.vmem [#allocation0], 80
    %34 = vst [vmem:[%s33] sm:%s4] %v32
    %s35 = smul.addr 4, 9
    %s36 = scalar_lea.vmem %s0, %s35
    %v37 = vld [vmem:[%s36] sm:%s4]
    %s38 = scalar_lea.vmem [#allocation0], 72
    %39 = vst [vmem:[%s38] sm:%s4] %v37
    %s40 = smul.addr 4, 8
    %s41 = scalar_lea.vmem %s0, %s40
    %v42 = vld [vmem:[%s41] sm:%s4]
    %s43 = scalar_lea.vmem [#allocation0], 64
    %44 = vst [vmem:[%s43] sm:%s4] %v42
    %s45 = smul.addr 4, 7
    %s46 = scalar_lea.vmem %s0, %s45
    %v47 = vld [vmem:[%s46] sm:%s4]
    %s48 = scalar_lea.vmem [#allocation0], 56
    %49 = vst [vmem:[%s48] sm:%s4] %v47
    %s50 = smul.addr 4, 6
    %s51 = scalar_lea.vmem %s0, %s50
    %v52 = vld [vmem:[%s51] sm:%s4]
    %s53 = scalar_lea.vmem [#allocation0], 48
    %54 = vst [vmem:[%s53] sm:%s4] %v52
    %s55 = smul.addr 4, 5
    %s56 = scalar_lea.vmem %s0, %s55
    %v57 = vld [vmem:[%s56] sm:%s4]
    %s58 = scalar_lea.vmem [#allocation0], 40
    %59 = vst [vmem:[%s58] sm:%s4] %v57
    %s60 = smul.addr 4, 4
    %s61 = scalar_lea.vmem %s0, %s60
    %v62 = vld [vmem:[%s61] sm:%s4]
    %s63 = scalar_lea.vmem [#allocation0], 32
    %64 = vst [vmem:[%s63] sm:%s4] %v62
    %s65 = smul.addr 4, 3
    %s66 = scalar_lea.vmem %s0, %s65
    %v67 = vld [vmem:[%s66] sm:%s4]
    %s68 = scalar_lea.vmem [#allocation0], 24
    %69 = vst [vmem:[%s68] sm:%s4] %v67
    %s70 = smul.addr 4, 2
    %s71 = scalar_lea.vmem %s0, %s70
    %v72 = vld [vmem:[%s71] sm:%s4]
    %s73 = scalar_lea.vmem [#allocation0], 16
    %74 = vst [vmem:[%s73] sm:%s4] %v72
    %s75 = scalar_lea.vmem %s0, 4
    %v76 = vld [vmem:[%s75] sm:%s4]
    %s77 = scalar_lea.vmem [#allocation0], 8
    %78 = vst [vmem:[%s77] sm:%s4] %v76
    %v79 = vld [vmem:[%s0] sm:%s4]
    %80 = vst [vmem:[#allocation0] sm:%s4] %v79
    %v81 = vld [vmem:[#allocation0] ss:$8 sm:$0xf]
    %v82 = vld [vmem:[#allocation0] ss:$8 sm:$0xf0]
    %vm83 = vcmask 1047556
    %v84 = vsel %vm83, %v82, %v81
    %vm85 = vcmask 261120
    %86 = vst.msk [vmem:[%s1] sm:$0xff] %vm85, %v84
    %s87 = scalar_lea.vmem [#allocation0], 64
    %v88 = vld [vmem:[%s87] ss:$8 sm:$0xf]
    %s89 = scalar_lea.vmem [#allocation0], 64
    %v90 = vld [vmem:[%s89] ss:$8 sm:$0xf0]
    %vm91 = vcmask 1047556
    %v92 = vsel %vm91, %v90, %v88
    %vm93 = vcmask 261120
    %s94 = scalar_lea.vmem %s1, 8
    %95 = vst.msk [vmem:[%s94] sm:$0xff] %vm93, %v92
    %s96 = scalar_lea.vmem [#allocation0], 3
    %v97 = vld [vmem:[%s96] ss:$8 sm:$0xf]
    %s98 = scalar_lea.vmem [#allocation0], 3
    %v99 = vld [vmem:[%s98] ss:$8 sm:$0xf0]
    %vm100 = vcmask 1047556
    %v101 = vsel %vm100, %v99, %v97
    %102 = vrot.lane.b32.xlu0 %v101, 96
    %v103 = vpop.permute.xlu0 %102
    %vm104 = vcmask 1048320
    %105 = vst.msk [vmem:[%s1] sm:$0xff] %vm104, %v103
    %s106 = scalar_lea.vmem [#allocation0], 67
    %v107 = vld [vmem:[%s106] ss:$8 sm:$0xf]
    %s108 = scalar_lea.vmem [#allocation0], 67
    %v109 = vld [vmem:[%s108] ss:$8 sm:$0xf0]
    %vm110 = vcmask 1047556
    %v111 = vsel %vm110, %v109, %v107
    %112 = vrot.lane.b32.xlu0 %v111, 96
    %v113 = vpop.permute.xlu0 %112
    %vm114 = vcmask 1048320
    %s115 = scalar_lea.vmem %s1, 8
    %116 = vst.msk [vmem:[%s115] sm:$0xff] %vm114, %v113
    %s117 = scalar_lea.vmem [#allocation0], 2
    %v118 = vld [vmem:[%s117] ss:$8 sm:$0xf]
    %s119 = scalar_lea.vmem [#allocation0], 2
    %v120 = vld [vmem:[%s119] ss:$8 sm:$0xf0]
    %vm121 = vcmask 1047556
    %v122 = vsel %vm121, %v120, %v118
    %123 = vrot.lane.b32.xlu0 %v122, 64
    %v124 = vpop.permute.xlu0 %123
    %vm125 = vcmask 785920
    %126 = vst.msk [vmem:[%s1] sm:$0xff] %vm125, %v124
    %s127 = scalar_lea.vmem [#allocation0], 66
    %v128 = vld [vmem:[%s127] ss:$8 sm:$0xf]
    %s129 = scalar_lea.vmem [#allocation0], 66
    %v130 = vld [vmem:[%s129] ss:$8 sm:$0xf0]
    %vm131 = vcmask 1047556
    %v132 = vsel %vm131, %v130, %v128
    %133 = vrot.lane.b32.xlu0 %v132, 64
    %v134 = vpop.permute.xlu0 %133
    %vm135 = vcmask 785920
    %s136 = scalar_lea.vmem %s1, 8
    %137 = vst.msk [vmem:[%s136] sm:$0xff] %vm135, %v134
    %s138 = scalar_lea.vmem [#allocation0], 1
    %v139 = vld [vmem:[%s138] ss:$8 sm:$0xf]
    %s140 = scalar_lea.vmem [#allocation0], 1
    %v141 = vld [vmem:[%s140] ss:$8 sm:$0xf0]
    %vm142 = vcmask 1047556
    %v143 = vsel %vm142, %v141, %v139
    %144 = vrot.lane.b32.xlu0 %v143, 32
    %v145 = vpop.permute.xlu0 %144
    %vm146 = vcmask 523520
    %147 = vst.msk [vmem:[%s1] sm:$0xff] %vm146, %v145
    %s148 = scalar_lea.vmem [#allocation0], 65
    %v149 = vld [vmem:[%s148] ss:$8 sm:$0xf]
    %s150 = scalar_lea.vmem [#allocation0], 65
    %v151 = vld [vmem:[%s150] ss:$8 sm:$0xf0]
    %vm152 = vcmask 1047556
    %v153 = vsel %vm152, %v151, %v149
    %154 = vrot.lane.b32.xlu0 %v153, 32
    %v155 = vpop.permute.xlu0 %154
    %vm156 = vcmask 523520
    %s157 = scalar_lea.vmem %s1, 8
    %158 = vst.msk [vmem:[%s157] sm:$0xff] %vm156, %v155

// kernel: complex_res_decoder.1
$region0: #{complex_res_decoder.1}
  #allocation0 [shape = 'u32[]', space=smem, size = 0x4, offset = 0x4, fixed_abs, tag = 'smem constant byte address 0x4 - core index']
  #allocation1 [shape = 'u32[144,128]{1,0:T(1,128)}', space=vmem, size = 0x12000, scoped, tag = 'internal scratch']
  %s0 = inlined_call_operand.vmem [shape: f32[16,48], index: 0, kind: input, shape index: {}]
  %s1 = inlined_call_operand.vmem [shape: f32[32,32], index: 1, kind: input, shape index: {}]
  %s2 = inlined_call_operand.vmem [shape: f32[16,128], index: 2, kind: input, shape index: {}]
  %s3 = inlined_call_operand.hbm [shape: f32[712,128], index: 3, kind: input, shape index: {}]
  %s4 = inlined_call_operand.hbm [shape: f32[16,32], index: 4, kind: output, shape index: {}]
  %s5 = sld [smem:[#allocation0]]
  $region30: #{complex_res_decoder.1} parent=0
    _
  %s7 = ssub.s32 1, %s5
  %s8 = scalar_select 0, %s7, %s5
  $region1: #{complex_res_decoder.1} parent=0
    #allocation2 [shape = 'u8[364544]{0}', space=vmem, size = 0x59000, scoped, tag = 'input window, operand 3, single buffered']
    #allocation3 [shape = 's32[1]{0}', space=sflag, size = 0x4, scoped, tag = 'scoped memory for complex_res_decoder.1']
    #allocation4 [shape = 's32[1]{0}', space=sflag, size = 0x4, scoped, tag = 'scoped memory for complex_res_decoder.1']
    #allocation5 [shape = 'u8[8192]{0}', space=vmem, size = 0x2000, scoped, tag = 'output window, operand 0, single buffered']
    %9 = vsyncpa [#allocation3], 0
    %10 = vsyncpa [#allocation4], 0
    // Predicated region
    $region2: #{complex_res_decoder.1} parent=1 // pred_check
      _
    $region3: #{complex_res_decoder.1} parent=1 // pred_check_branch
      %12 = sbr.rel (0) target = $region5
    $region4: #{complex_res_decoder.1} parent=1 // pred_region
      _
    $region5: #{complex_res_decoder.1} parent=1 // pred_fallthru
      _
    // Predicated region
    $region6: #{complex_res_decoder.1} parent=1 // pred_check
      _
    $region7: #{complex_res_decoder.1} parent=1 // pred_check_branch
      %14 = sbr.rel (0) target = $region9
    $region8: #{complex_res_decoder.1} parent=1 // pred_region
      _
    $region9: #{complex_res_decoder.1} parent=1 // pred_fallthru
      _
    // Predicated region
    $region10: #{complex_res_decoder.1} parent=1 // pred_check
      _
    $region11: #{complex_res_decoder.1} parent=1 // pred_check_branch
      %16 = sbr.rel (0) target = $region13
    $region12: #{complex_res_decoder.1} parent=1 // pred_region
      _
    $region13: #{complex_res_decoder.1} parent=1 // pred_fallthru
      _
    // Predicated region
    $region14: #{complex_res_decoder.1} parent=1 // pred_check
      _
    $region15: #{complex_res_decoder.1} parent=1 // pred_check_branch
      %18 = sbr.rel (0) target = $region17
    $region16: #{complex_res_decoder.1} parent=1 // pred_region
      %s20 = ssub.s32 11392, 11392
      %21 = vsyncadd [#allocation3], %s20
      %s22 = sshll.u32 [#allocation2], 4
      %s23 = int_to_ptr.vmem [resolvable:$true] %s22
      %28 = dma.hbm_to_vmem [thread:$0]  %s3, 11392, %s23, [#allocation3], 128, 128, 8
    $region17: #{complex_res_decoder.1} parent=1 // pred_fallthru
      _
    // Predicated region
    $region18: #{complex_res_decoder.1} parent=1 // pred_check
      _
    $region19: #{complex_res_decoder.1} parent=1 // pred_check_branch
      %30 = sbr.rel (0) target = $region21
    $region20: #{complex_res_decoder.1} parent=1 // pred_region
      %31 = dma.done [#allocation3], 11392
    $region21: #{complex_res_decoder.1} parent=1 // pred_fallthru
      _
    %v32 = vld [vmem:[%s0] sm:$0xff]
    %v33 = vld [vmem:[%s0 + $0x8] sm:$0xff]
    %v34 = vld [vmem:[%s1] sm:$0xff]
    %v35 = vld [vmem:[%s1 + $0x8] sm:$0xff]
    %v36 = vld [vmem:[%s1 + $0x10] sm:$0xff]
    %v37 = vld [vmem:[%s1 + $0x18] sm:$0xff]
    %v38 = vld [vmem:[%s2] sm:$0xff]
    %v39 = vld [vmem:[%s2 + $0x8] sm:$0xff]
    %v40 = vld [vmem:[#allocation2] sm:$0xff]
    %v41 = vld [vmem:[#allocation2 + $0x8] sm:$0xff]
    %v42 = vld [vmem:[#allocation2 + $0x10] sm:$0xff]
    %v43 = vld [vmem:[#allocation2 + $0x18] sm:$0xff]
    %v44 = vld [vmem:[#allocation2 + $0x20] sm:$0xff]
    %v45 = vld [vmem:[#allocation2 + $0x28] sm:$0xff]
    %v46 = vld [vmem:[#allocation2 + $0x30] sm:$0xff]
    %v47 = vld [vmem:[#allocation2 + $0x38] sm:$0xff]
    %v48 = vld [vmem:[#allocation2 + $0x40] sm:$0xff]
    %v49 = vld [vmem:[#allocation2 + $0x48] sm:$0xff]
    %v50 = vld [vmem:[#allocation2 + $0x50] sm:$0xff]
    %v51 = vld [vmem:[#allocation2 + $0x58] sm:$0xff]
    %v52 = vld [vmem:[#allocation2 + $0x60] sm:$0xff]
    %v53 = vld [vmem:[#allocation2 + $0x68] sm:$0xff]
    %v54 = vld [vmem:[#allocation2 + $0x70] sm:$0xff]
    %v55 = vld [vmem:[#allocation2 + $0x78] sm:$0xff]
    %v56 = vld [vmem:[#allocation2 + $0x80] sm:$0xff]
    %v57 = vld [vmem:[#allocation2 + $0x88] sm:$0xff]
    %v58 = vld [vmem:[#allocation2 + $0x90] sm:$0xff]
    %v59 = vld [vmem:[#allocation2 + $0x98] sm:$0xff]
    %v60 = vld [vmem:[#allocation2 + $0xa0] sm:$0xff]
    %v61 = vld [vmem:[#allocation2 + $0xa8] sm:$0xff]
    %v62 = vld [vmem:[#allocation2 + $0xb0] sm:$0xff]
    %v63 = vld [vmem:[#allocation2 + $0xb8] sm:$0xff]
    %v64 = vld [vmem:[#allocation2 + $0xc0] sm:$0xff]
    %v65 = vld [vmem:[#allocation2 + $0xc8] sm:$0xff]
    %v66 = vld [vmem:[#allocation2 + $0xd0] sm:$0xff]
    %v67 = vld [vmem:[#allocation2 + $0xd8] sm:$0xff]
    %v68 = vld [vmem:[#allocation2 + $0xe0] sm:$0xff]
    %v69 = vld [vmem:[#allocation2 + $0xe8] sm:$0xff]
    %v70 = vld [vmem:[#allocation2 + $0xf0] sm:$0xff]
    %v71 = vld [vmem:[#allocation2 + $0xf8] sm:$0xff]
    %v72 = vld [vmem:[#allocation2 + $0x100] sm:$0xff]
    %v73 = vld [vmem:[#allocation2 + $0x108] sm:$0xff]
    %v74 = vld [vmem:[#allocation2 + $0x110] sm:$0xff]
    %v75 = vld [vmem:[#allocation2 + $0x118] sm:$0xff]
    %v76 = vld [vmem:[#allocation2 + $0x120] sm:$0xff]
    %v77 = vld [vmem:[#allocation2 + $0x128] sm:$0xff]
    %v78 = vld [vmem:[#allocation2 + $0x130] sm:$0xff]
    %v79 = vld [vmem:[#allocation2 + $0x138] sm:$0xff]
    %v80 = vld [vmem:[#allocation2 + $0x140] sm:$0xff]
    %v81 = vld [vmem:[#allocation2 + $0x148] sm:$0xff]
    %v82 = vld [vmem:[#allocation2 + $0x150] sm:$0xff]
    %v83 = vld [vmem:[#allocation2 + $0x158] sm:$0xff]
    %v84 = vld [vmem:[#allocation2 + $0x160] sm:$0xff]
    %v85 = vld [vmem:[#allocation2 + $0x168] sm:$0xff]
    %v86 = vld [vmem:[#allocation2 + $0x170] sm:$0xff]
    %v87 = vld [vmem:[#allocation2 + $0x178] sm:$0xff]
    %v88 = vld [vmem:[#allocation2 + $0x180] sm:$0xff]
    %v89 = vld [vmem:[#allocation2 + $0x188] sm:$0xff]
    %v90 = vld [vmem:[#allocation2 + $0x190] sm:$0xff]
    %v91 = vld [vmem:[#allocation2 + $0x198] sm:$0xff]
    %v92 = vld [vmem:[#allocation2 + $0x1a0] sm:$0xff]
    %v93 = vld [vmem:[#allocation2 + $0x1a8] sm:$0xff]
    %v94 = vld [vmem:[#allocation2 + $0x1b0] sm:$0xff]
    %v95 = vld [vmem:[#allocation2 + $0x1b8] sm:$0xff]
    %v96 = vld [vmem:[#allocation2 + $0x1c0] sm:$0xff]
    %v97 = vld [vmem:[#allocation2 + $0x1c8] sm:$0xff]
    %v98 = vld [vmem:[#allocation2 + $0x1d0] sm:$0xff]
    %v99 = vld [vmem:[#allocation2 + $0x1d8] sm:$0xff]
    %v100 = vld [vmem:[#allocation2 + $0x1e0] sm:$0xff]
    %v101 = vld [vmem:[#allocation2 + $0x1e8] sm:$0xff]
    %v102 = vld [vmem:[#allocation2 + $0x1f0] sm:$0xff]
    %v103 = vld [vmem:[#allocation2 + $0x1f8] sm:$0xff]
    %v104 = vld [vmem:[#allocation2 + $0x200] sm:$0xff]
    %v105 = vld [vmem:[#allocation2 + $0x208] sm:$0xff]
    %v106 = vld [vmem:[#allocation2 + $0x210] sm:$0xff]
    %v107 = vld [vmem:[#allocation2 + $0x218] sm:$0xff]
    %v108 = vld [vmem:[#allocation2 + $0x220] sm:$0xff]
    %v109 = vld [vmem:[#allocation2 + $0x228] sm:$0xff]
    %v110 = vld [vmem:[#allocation2 + $0x230] sm:$0xff]
    %v111 = vld [vmem:[#allocation2 + $0x238] sm:$0xff]
    %v112 = vld [vmem:[#allocation2 + $0x240] sm:$0xff]
    %v113 = vld [vmem:[#allocation2 + $0x248] sm:$0xff]
    %v114 = vld [vmem:[#allocation2 + $0x250] sm:$0xff]
    %v115 = vld [vmem:[#allocation2 + $0x258] sm:$0xff]
    %v116 = vld [vmem:[#allocation2 + $0x260] sm:$0xff]
    %v117 = vld [vmem:[#allocation2 + $0x268] sm:$0xff]
    %v118 = vld [vmem:[#allocation2 + $0x270] sm:$0xff]
    %v119 = vld [vmem:[#allocation2 + $0x278] sm:$0xff]
    %v120 = vld [vmem:[#allocation2 + $0x280] sm:$0xff]
    %v121 = vld [vmem:[#allocation2 + $0x288] sm:$0xff]
    %v122 = vld [vmem:[#allocation2 + $0x290] sm:$0xff]
    %v123 = vld [vmem:[#allocation2 + $0x298] sm:$0xff]
    %v124 = vld [vmem:[#allocation2 + $0x2a0] sm:$0xff]
    %v125 = vld [vmem:[#allocation2 + $0x2a8] sm:$0xff]
    %v126 = vld [vmem:[#allocation2 + $0x2b0] sm:$0xff]
    %v127 = vld [vmem:[#allocation2 + $0x2b8] sm:$0xff]
    %v128 = vld [vmem:[#allocation2 + $0x2c0] sm:$0x1]
    %v129 = vld [vmem:[#allocation2 + $0x2c1] sm:$0x1]
    %v130 = vld [vmem:[#allocation2 + $0x2c2] sm:$0x1]
    %v131 = vld [vmem:[#allocation2 + $0x2c3] sm:$0x1]
    %v132 = vld [vmem:[#allocation2 + $0x2c4] sm:$0x1]
    %v133 = vld [vmem:[#allocation2 + $0x2c5] sm:$0x1]
    %v134 = vld [vmem:[#allocation2 + $0x2c6] sm:$0x1]
    %v135 = vld [vmem:[#allocation2 + $0x2c7] sm:$0x1]
    %vm136 = vcmask 392192
    %v138 = vsel %vm136, %v32, 0
    %v141 = vsel %vm136, %v33, 0
    %143 = vmatprep.subr.mxu0 0.0
    %144 = vmatpush1.msra.mxu0 0.0
    %145 = vmatprep.subr.mxu0 0.0
    %146 = vmatpush1.msra.mxu0 0.0
    %147 = vmatprep.subr.mxu0 0.0
    %148 = vmatpush1.msra.mxu0 0.0
    %149 = vmatprep.subr.mxu0 0.0
    %150 = vmatpush1.msra.mxu0 0.0
    %151 = vmatprep.subr.mxu0 0.0
    %152 = vmatpush1.msra.mxu0 0.0
    %153 = vmatprep.subr.mxu0 0.0
    %154 = vmatpush1.msra.mxu0 0.0
    %155 = vmatprep.subr.mxu0 0.0
    %156 = vmatpush1.msra.mxu0 0.0
    %157 = vmatprep.subr.mxu0 0.0
    %158 = vmatpush1.msra.mxu0 0.0
    %159 = vmatprep.subr.mxu0 0.0
    %160 = vmatpush1.msra.mxu0 0.0
    %161 = vmatprep.subr.mxu0 0.0
    %162 = vmatpush1.msra.mxu0 0.0
    %163 = vmatprep.subr.mxu0 0.0
    %164 = vmatpush1.msra.mxu0 %v45
    %165 = vmatprep.subr.mxu0 0.0
    %166 = vmatpush1.msra.mxu0 %v44
    %167 = vmatprep.subr.mxu0 0.0
    %168 = vmatpush1.msra.mxu0 %v43
    %169 = vmatprep.subr.mxu0 0.0
    %170 = vmatpush1.msra.mxu0 %v42
    %171 = vmatprep.subr.mxu0 0.0
    %172 = vmatpush1.msra.mxu0 %v41
    %173 = vmatprep.subr.mxu0 0.0
    %174 = vmatpush1.msra.mxu0 %v40
    %175 = vmatprep.subr.mxu0 0.0
    %176 = vmatpush2.msra.mxu0 0.0
    %177 = vmatprep.subr.mxu0 0.0
    %178 = vmatpush2.msra.mxu0 0.0
    %179 = vmatprep.subr.mxu0 0.0
    %180 = vmatpush2.msra.mxu0 0.0
    %181 = vmatprep.subr.mxu0 0.0
    %182 = vmatpush2.msra.mxu0 0.0
    %183 = vmatprep.subr.mxu0 0.0
    %184 = vmatpush2.msra.mxu0 0.0
    %185 = vmatprep.subr.mxu0 0.0
    %186 = vmatpush2.msra.mxu0 0.0
    %187 = vmatprep.subr.mxu0 0.0
    %188 = vmatpush2.msra.mxu0 0.0
    %189 = vmatprep.subr.mxu0 0.0
    %190 = vmatpush2.msra.mxu0 0.0
    %191 = vmatprep.subr.mxu0 0.0
    %192 = vmatpush2.msra.mxu0 0.0
    %193 = vmatprep.subr.mxu0 0.0
    %194 = vmatpush2.msra.mxu0 0.0
    %195 = vmatprep.subr.mxu0 0.0
    %196 = vmatpush2.msra.mxu0 0.0
    %197 = vmatprep.subr.mxu0 0.0
    %198 = vmatpush2.msra.mxu0 0.0
    %199 = vmatprep.subr.mxu0 0.0
    %200 = vmatpush2.msra.mxu0 0.0
    %201 = vmatprep.subr.mxu0 0.0
    %202 = vmatpush2.msra.mxu0 0.0
    %203 = vmatprep.subr.mxu0 0.0
    %204 = vmatpush2.msra.mxu0 0.0
    %205 = vmatprep.subr.mxu0 0.0
    %206 = vmatpush2.msra.mxu0 0.0
    %207 = vmatprep.mubr.f32.mxu0 0.0
    %208 = vmatmul.mubr.f32.gmra.mxu0 %v138
    %v209 = vpop.f32.mrf.mxu0
    %v210 = vadd.f32 %v46, %v209
    %v211 = vpop.f32.mrf.mxu0
    %212 = vmatprep.mubr.f32.mxu0 0.0
    %213 = vmatmul.mubr.f32.gmra.mxu0 %v141
    %v214 = vpop.f32.mrf.mxu0
    %v215 = vadd.f32 %v47, %v214
    %v216 = vpop.f32.mrf.mxu0
    %217 = vdwg.mxu0
    %vm218 = vcmask 261120
    %v219 = vsel %vm218, %v210, 0.0
    %220 = vadd.xlane.f32.xlu0 %v219
    %v221 = vpop.xlane.xlu0 %220
    %v222 = vsel %vm218, %v215, 0.0
    %223 = vadd.xlane.f32.xlu0 %v222
    %v224 = vpop.xlane.xlu0 %223
    %v225 = vrcp.pop 32.0
    %v226 = vmul.f32 %v221, %v225
    %v227 = vmul.f32 %v224, %v225
    %v228 = vsub.f32 %v210, %v226
    %v229 = vsub.f32 %v215, %v227
    %v230 = vmul.f32 %v228, %v228
    %v231 = vmul.f32 %v229, %v229
    %v232 = vsel %vm218, %v230, 0.0
    %233 = vadd.xlane.f32.xlu0 %v232
    %v234 = vpop.xlane.xlu0 %233
    %v235 = vsel %vm218, %v231, 0.0
    %236 = vadd.xlane.f32.xlu0 %v235
    %v237 = vpop.xlane.xlu0 %236
    %v238 = vmul.f32 %v234, 0.032258064
    %v239 = vmul.f32 %v237, 0.032258064
    %v240 = vrsqrt.pop %v238
    %v241 = vmul.f32 %v238, %v240
    %vm242 = vcmp.eq.f32.partialorder %v238, inf
    %v243 = vsel %vm242, %v238, %v241
    %vm244 = vcmp.eq.f32.partialorder %v238, 0.0
    %v245 = vand.u32 %v238, 2147483648
    %v246 = vsel %vm244, %v245, %v243
    %v247 = vrsqrt.pop %v239
    %v248 = vmul.f32 %v239, %v247
    %vm249 = vcmp.eq.f32.partialorder %v239, inf
    %v250 = vsel %vm249, %v239, %v248
    %vm251 = vcmp.eq.f32.partialorder %v239, 0.0
    %v252 = vand.u32 %v239, 2147483648
    %v253 = vsel %vm251, %v252, %v250
    %v254 = vadd.f32 %v246, 1e-06
    %v255 = vadd.f32 %v253, 1e-06
    %v256 = vrcp.pop %v254
    %v257 = vrcp.pop %v255
    %v258 = vlaneseq
    %v259 = vshrl.u32 %v258, 7
    %v260 = vsub.s32 0, %v259
    %v261 = vrot.slane %v128, %v260
    %v262 = vmul.f32 %v261, %v228
    %v263 = vmul.f32 %v261, %v229
    %v264 = vmul.f32 %v262, %v256
    %v265 = vmul.f32 %v263, %v257
    %v266 = vlaneseq
    %v267 = vshrl.u32 %v266, 7
    %v268 = vsub.s32 0, %v267
    %v269 = vrot.slane %v129, %v268
    %v270 = vadd.f32 %v264, %v269
    %v271 = vadd.f32 %v265, %v269
    %v273 = vsel %vm218, %v270, 0
    %v276 = vsel %vm218, %v271, 0
    %278 = vmatprep.subr.mxu0 0.0
    %279 = vmatpush1.msra.mxu0 0.0
    %280 = vmatprep.subr.mxu0 0.0
    %281 = vmatpush1.msra.mxu0 0.0
    %282 = vmatprep.subr.mxu0 0.0
    %283 = vmatpush1.msra.mxu0 0.0
    %284 = vmatprep.subr.mxu0 0.0
    %285 = vmatpush1.msra.mxu0 0.0
    %286 = vmatprep.subr.mxu0 0.0
    %287 = vmatpush1.msra.mxu0 0.0
    %288 = vmatprep.subr.mxu0 0.0
    %289 = vmatpush1.msra.mxu0 0.0
    %290 = vmatprep.subr.mxu0 0.0
    %291 = vmatpush1.msra.mxu0 0.0
    %292 = vmatprep.subr.mxu0 0.0
    %293 = vmatpush1.msra.mxu0 0.0
    %294 = vmatprep.subr.mxu0 0.0
    %295 = vmatpush1.msra.mxu0 0.0
    %296 = vmatprep.subr.mxu0 0.0
    %297 = vmatpush1.msra.mxu0 0.0
    %298 = vmatprep.subr.mxu0 0.0
    %299 = vmatpush1.msra.mxu0 0.0
    %300 = vmatprep.subr.mxu0 0.0
    %301 = vmatpush1.msra.mxu0 0.0
    %302 = vmatprep.subr.mxu0 0.0
    %303 = vmatpush1.msra.mxu0 %v51
    %304 = vmatprep.subr.mxu0 0.0
    %305 = vmatpush1.msra.mxu0 %v50
    %306 = vmatprep.subr.mxu0 0.0
    %307 = vmatpush1.msra.mxu0 %v49
    %308 = vmatprep.subr.mxu0 0.0
    %309 = vmatpush1.msra.mxu0 %v48
    %310 = vmatprep.subr.mxu0 0.0
    %311 = vmatpush2.msra.mxu0 0.0
    %312 = vmatprep.subr.mxu0 0.0
    %313 = vmatpush2.msra.mxu0 0.0
    %314 = vmatprep.subr.mxu0 0.0
    %315 = vmatpush2.msra.mxu0 0.0
    %316 = vmatprep.subr.mxu0 0.0
    %317 = vmatpush2.msra.mxu0 0.0
    %318 = vmatprep.subr.mxu0 0.0
    %319 = vmatpush2.msra.mxu0 0.0
    %320 = vmatprep.subr.mxu0 0.0
    %321 = vmatpush2.msra.mxu0 0.0
    %322 = vmatprep.subr.mxu0 0.0
    %323 = vmatpush2.msra.mxu0 0.0
    %324 = vmatprep.subr.mxu0 0.0
    %325 = vmatpush2.msra.mxu0 0.0
    %326 = vmatprep.subr.mxu0 0.0
    %327 = vmatpush2.msra.mxu0 0.0
    %328 = vmatprep.subr.mxu0 0.0
    %329 = vmatpush2.msra.mxu0 0.0
    %330 = vmatprep.subr.mxu0 0.0
    %331 = vmatpush2.msra.mxu0 0.0
    %332 = vmatprep.subr.mxu0 0.0
    %333 = vmatpush2.msra.mxu0 0.0
    %334 = vmatprep.subr.mxu0 0.0
    %335 = vmatpush2.msra.mxu0 0.0
    %336 = vmatprep.subr.mxu0 0.0
    %337 = vmatpush2.msra.mxu0 0.0
    %338 = vmatprep.subr.mxu0 0.0
    %339 = vmatpush2.msra.mxu0 0.0
    %340 = vmatprep.subr.mxu0 0.0
    %341 = vmatpush2.msra.mxu0 0.0
    %342 = vmatprep.mubr.f32.mxu0 0.0
    %343 = vmatmul.mubr.f32.gmra.mxu0 %v273
    %v344 = vpop.f32.mrf.mxu0
    %v345 = vadd.f32 0.0, %v344
    %v346 = vpop.f32.mrf.mxu0
    %347 = vmatprep.mubr.f32.mxu0 0.0
    %348 = vmatmul.mubr.f32.gmra.mxu0 %v276
    %v349 = vpop.f32.mrf.mxu0
    %v350 = vadd.f32 0.0, %v349
    %v351 = vpop.f32.mrf.mxu0
    %352 = vdwg.mxu0
    %v354 = vsel %vm218, %v34, 0
    %v357 = vsel %vm218, %v35, 0
    %v360 = vsel %vm218, %v36, 0
    %v363 = vsel %vm218, %v37, 0
    %365 = vmatprep.subr.mxu0 0.0
    %366 = vmatpush1.msra.mxu0 0.0
    %367 = vmatprep.subr.mxu0 0.0
    %368 = vmatpush1.msra.mxu0 0.0
    %369 = vmatprep.subr.mxu0 0.0
    %370 = vmatpush1.msra.mxu0 0.0
    %371 = vmatprep.subr.mxu0 0.0
    %372 = vmatpush1.msra.mxu0 0.0
    %373 = vmatprep.subr.mxu0 0.0
    %374 = vmatpush1.msra.mxu0 0.0
    %375 = vmatprep.subr.mxu0 0.0
    %376 = vmatpush1.msra.mxu0 0.0
    %377 = vmatprep.subr.mxu0 0.0
    %378 = vmatpush1.msra.mxu0 0.0
    %379 = vmatprep.subr.mxu0 0.0
    %380 = vmatpush1.msra.mxu0 0.0
    %381 = vmatprep.subr.mxu0 0.0
    %382 = vmatpush1.msra.mxu0 0.0
    %383 = vmatprep.subr.mxu0 0.0
    %384 = vmatpush1.msra.mxu0 0.0
    %385 = vmatprep.subr.mxu0 0.0
    %386 = vmatpush1.msra.mxu0 0.0
    %387 = vmatprep.subr.mxu0 0.0
    %388 = vmatpush1.msra.mxu0 0.0
    %389 = vmatprep.subr.mxu0 0.0
    %390 = vmatpush1.msra.mxu0 %v55
    %391 = vmatprep.subr.mxu0 0.0
    %392 = vmatpush1.msra.mxu0 %v54
    %393 = vmatprep.subr.mxu0 0.0
    %394 = vmatpush1.msra.mxu0 %v53
    %395 = vmatprep.subr.mxu0 0.0
    %396 = vmatpush1.msra.mxu0 %v52
    %397 = vmatprep.subr.mxu0 0.0
    %398 = vmatpush2.msra.mxu0 0.0
    %399 = vmatprep.subr.mxu0 0.0
    %400 = vmatpush2.msra.mxu0 0.0
    %401 = vmatprep.subr.mxu0 0.0
    %402 = vmatpush2.msra.mxu0 0.0
    %403 = vmatprep.subr.mxu0 0.0
    %404 = vmatpush2.msra.mxu0 0.0
    %405 = vmatprep.subr.mxu0 0.0
    %406 = vmatpush2.msra.mxu0 0.0
    %407 = vmatprep.subr.mxu0 0.0
    %408 = vmatpush2.msra.mxu0 0.0
    %409 = vmatprep.subr.mxu0 0.0
    %410 = vmatpush2.msra.mxu0 0.0
    %411 = vmatprep.subr.mxu0 0.0
    %412 = vmatpush2.msra.mxu0 0.0
    %413 = vmatprep.subr.mxu0 0.0
    %414 = vmatpush2.msra.mxu0 0.0
    %415 = vmatprep.subr.mxu0 0.0
    %416 = vmatpush2.msra.mxu0 0.0
    %417 = vmatprep.subr.mxu0 0.0
    %418 = vmatpush2.msra.mxu0 0.0
    %419 = vmatprep.subr.mxu0 0.0
    %420 = vmatpush2.msra.mxu0 0.0
    %421 = vmatprep.subr.mxu0 0.0
    %422 = vmatpush2.msra.mxu0 0.0
    %423 = vmatprep.subr.mxu0 0.0
    %424 = vmatpush2.msra.mxu0 0.0
    %425 = vmatprep.subr.mxu0 0.0
    %426 = vmatpush2.msra.mxu0 0.0
    %427 = vmatprep.subr.mxu0 0.0
    %428 = vmatpush2.msra.mxu0 0.0
    %429 = vmatprep.mubr.f32.mxu0 0.0
    %430 = vmatmul.mubr.f32.gmra.mxu0 %v354
    %v431 = vpop.f32.mrf.mxu0
    %v432 = vadd.f32 0.0, %v431
    %v433 = vpop.f32.mrf.mxu0
    %434 = vmatprep.mubr.f32.mxu0 0.0
    %435 = vmatmul.mubr.f32.gmra.mxu0 %v357
    %v436 = vpop.f32.mrf.mxu0
    %v437 = vadd.f32 0.0, %v436
    %v438 = vpop.f32.mrf.mxu0
    %439 = vmatprep.mubr.f32.mxu0 0.0
    %440 = vmatmul.mubr.f32.gmra.mxu0 %v360
    %v441 = vpop.f32.mrf.mxu0
    %v442 = vadd.f32 0.0, %v441
    %v443 = vpop.f32.mrf.mxu0
    %444 = vmatprep.mubr.f32.mxu0 0.0
    %445 = vmatmul.mubr.f32.gmra.mxu0 %v363
    %v446 = vpop.f32.mrf.mxu0
    %v447 = vadd.f32 0.0, %v446
    %v448 = vpop.f32.mrf.mxu0
    %449 = vdwg.mxu0
    %450 = vmatprep.subr.mxu0 0.0
    %451 = vmatpush1.msra.mxu0 0.0
    %452 = vmatprep.subr.mxu0 0.0
    %453 = vmatpush1.msra.mxu0 0.0
    %454 = vmatprep.subr.mxu0 0.0
    %455 = vmatpush1.msra.mxu0 0.0
    %456 = vmatprep.subr.mxu0 0.0
    %457 = vmatpush1.msra.mxu0 0.0
    %458 = vmatprep.subr.mxu0 0.0
    %459 = vmatpush1.msra.mxu0 0.0
    %460 = vmatprep.subr.mxu0 0.0
    %461 = vmatpush1.msra.mxu0 0.0
    %462 = vmatprep.subr.mxu0 0.0
    %463 = vmatpush1.msra.mxu0 0.0
    %464 = vmatprep.subr.mxu0 0.0
    %465 = vmatpush1.msra.mxu0 0.0
    %466 = vmatprep.subr.mxu0 0.0
    %467 = vmatpush1.msra.mxu0 0.0
    %468 = vmatprep.subr.mxu0 0.0
    %469 = vmatpush1.msra.mxu0 0.0
    %470 = vmatprep.subr.mxu0 0.0
    %471 = vmatpush1.msra.mxu0 0.0
    %472 = vmatprep.subr.mxu0 0.0
    %473 = vmatpush1.msra.mxu0 0.0
    %474 = vmatprep.subr.mxu0 0.0
    %475 = vmatpush1.msra.mxu0 %v59
    %476 = vmatprep.subr.mxu0 0.0
    %477 = vmatpush1.msra.mxu0 %v58
    %478 = vmatprep.subr.mxu0 0.0
    %479 = vmatpush1.msra.mxu0 %v57
    %480 = vmatprep.subr.mxu0 0.0
    %481 = vmatpush1.msra.mxu0 %v56
    %482 = vmatprep.subr.mxu0 0.0
    %483 = vmatpush2.msra.mxu0 0.0
    %484 = vmatprep.subr.mxu0 0.0
    %485 = vmatpush2.msra.mxu0 0.0
    %486 = vmatprep.subr.mxu0 0.0
    %487 = vmatpush2.msra.mxu0 0.0
    %488 = vmatprep.subr.mxu0 0.0
    %489 = vmatpush2.msra.mxu0 0.0
    %490 = vmatprep.subr.mxu0 0.0
    %491 = vmatpush2.msra.mxu0 0.0
    %492 = vmatprep.subr.mxu0 0.0
    %493 = vmatpush2.msra.mxu0 0.0
    %494 = vmatprep.subr.mxu0 0.0
    %495 = vmatpush2.msra.mxu0 0.0
    %496 = vmatprep.subr.mxu0 0.0
    %497 = vmatpush2.msra.mxu0 0.0
    %498 = vmatprep.subr.mxu0 0.0
    %499 = vmatpush2.msra.mxu0 0.0
    %500 = vmatprep.subr.mxu0 0.0
    %501 = vmatpush2.msra.mxu0 0.0
    %502 = vmatprep.subr.mxu0 0.0
    %503 = vmatpush2.msra.mxu0 0.0
    %504 = vmatprep.subr.mxu0 0.0
    %505 = vmatpush2.msra.mxu0 0.0
    %506 = vmatprep.subr.mxu0 0.0
    %507 = vmatpush2.msra.mxu0 0.0
    %508 = vmatprep.subr.mxu0 0.0
    %509 = vmatpush2.msra.mxu0 0.0
    %510 = vmatprep.subr.mxu0 0.0
    %511 = vmatpush2.msra.mxu0 0.0
    %512 = vmatprep.subr.mxu0 0.0
    %513 = vmatpush2.msra.mxu0 0.0
    %514 = vmatprep.mubr.f32.mxu0 0.0
    %515 = vmatmul.mubr.f32.gmra.mxu0 %v354
    %v516 = vpop.f32.mrf.mxu0
    %v517 = vadd.f32 0.0, %v516
    %v518 = vpop.f32.mrf.mxu0
    %519 = vmatprep.mubr.f32.mxu0 0.0
    %520 = vmatmul.mubr.f32.gmra.mxu0 %v357
    %v521 = vpop.f32.mrf.mxu0
    %v522 = vadd.f32 0.0, %v521
    %v523 = vpop.f32.mrf.mxu0
    %524 = vmatprep.mubr.f32.mxu0 0.0
    %525 = vmatmul.mubr.f32.gmra.mxu0 %v360
    %v526 = vpop.f32.mrf.mxu0
    %v527 = vadd.f32 0.0, %v526
    %v528 = vpop.f32.mrf.mxu0
    %529 = vmatprep.mubr.f32.mxu0 0.0
    %530 = vmatmul.mubr.f32.gmra.mxu0 %v363
    %v531 = vpop.f32.mrf.mxu0
    %v532 = vadd.f32 0.0, %v531
    %v533 = vpop.f32.mrf.mxu0
    %534 = vdwg.mxu0
    %v535 = vmul.f32 %v432, %v64
    %v536 = vmul.f32 %v437, %v65
    %v537 = vmul.f32 %v442, %v66
    %v538 = vmul.f32 %v447, %v67
    %v539 = vmul.f32 %v432, %v68
    %v540 = vmul.f32 %v437, %v69
    %v541 = vmul.f32 %v442, %v70
    %v542 = vmul.f32 %v447, %v71
    %v543 = vmul.f32 %v432, %v72
    %v544 = vmul.f32 %v437, %v73
    %v545 = vmul.f32 %v442, %v74
    %v546 = vmul.f32 %v447, %v75
    %v547 = vmul.f32 %v432, %v76
    %v548 = vmul.f32 %v437, %v77
    %v549 = vmul.f32 %v442, %v78
    %v550 = vmul.f32 %v447, %v79
    %v551 = vmul.f32 %v517, %v64
    %v552 = vmul.f32 %v522, %v65
    %v553 = vmul.f32 %v527, %v66
    %v554 = vmul.f32 %v532, %v67
    %v555 = vmul.f32 %v517, %v68
    %v556 = vmul.f32 %v522, %v69
    %v557 = vmul.f32 %v527, %v70
    %v558 = vmul.f32 %v532, %v71
    %v559 = vmul.f32 %v517, %v72
    %v560 = vmul.f32 %v522, %v73
    %v561 = vmul.f32 %v527, %v74
    %v562 = vmul.f32 %v532, %v75
    %v563 = vmul.f32 %v517, %v76
    %v564 = vmul.f32 %v522, %v77
    %v565 = vmul.f32 %v527, %v78
    %v566 = vmul.f32 %v532, %v79
    %v568 = vsel %vm218, %v345, 0
    %v571 = vsel %vm218, %v350, 0
    %v574 = vsel %vm218, %v535, 0
    %v577 = vsel %vm218, %v536, 0
    %v580 = vsel %vm218, %v537, 0
    %v583 = vsel %vm218, %v538, 0
    %v586 = vsel %vm218, %v539, 0
    %v589 = vsel %vm218, %v540, 0
    %v592 = vsel %vm218, %v541, 0
    %v595 = vsel %vm218, %v542, 0
    %v598 = vsel %vm218, %v543, 0
    %v601 = vsel %vm218, %v544, 0
    %v604 = vsel %vm218, %v545, 0
    %v607 = vsel %vm218, %v546, 0
    %v610 = vsel %vm218, %v547, 0
    %v613 = vsel %vm218, %v548, 0
    %v616 = vsel %vm218, %v549, 0
    %v619 = vsel %vm218, %v550, 0
    %621 = vmatprep.subr.mxu0 0.0
    %622 = vmatpush1.xpose.msra.mxu0 %v619
    %623 = vmatprep.subr.mxu0 0.0
    %624 = vmatpush1.xpose.msra.mxu0 %v616
    %625 = vmatprep.subr.mxu0 0.0
    %626 = vmatpush1.xpose.msra.mxu0 %v613
    %627 = vmatprep.subr.mxu0 0.0
    %628 = vmatpush1.xpose.msra.mxu0 %v610
    %629 = vmatprep.subr.mxu0 0.0
    %630 = vmatpush1.xpose.msra.mxu0 %v607
    %631 = vmatprep.subr.mxu0 0.0
    %632 = vmatpush1.xpose.msra.mxu0 %v604
    %633 = vmatprep.subr.mxu0 0.0
    %634 = vmatpush1.xpose.msra.mxu0 %v601
    %635 = vmatprep.subr.mxu0 0.0
    %636 = vmatpush1.xpose.msra.mxu0 %v598
    %637 = vmatprep.subr.mxu0 0.0
    %638 = vmatpush1.xpose.msra.mxu0 %v595
    %639 = vmatprep.subr.mxu0 0.0
    %640 = vmatpush1.xpose.msra.mxu0 %v592
    %641 = vmatprep.subr.mxu0 0.0
    %642 = vmatpush1.xpose.msra.mxu0 %v589
    %643 = vmatprep.subr.mxu0 0.0
    %644 = vmatpush1.xpose.msra.mxu0 %v586
    %645 = vmatprep.subr.mxu0 0.0
    %646 = vmatpush1.xpose.msra.mxu0 %v583
    %647 = vmatprep.subr.mxu0 0.0
    %648 = vmatpush1.xpose.msra.mxu0 %v580
    %649 = vmatprep.subr.mxu0 0.0
    %650 = vmatpush1.xpose.msra.mxu0 %v577
    %651 = vmatprep.subr.mxu0 0.0
    %652 = vmatpush1.xpose.msra.mxu0 %v574
    %653 = vmatprep.subr.mxu0 0.0
    %654 = vmatpush2.xpose.msra.mxu0 0.0
    %655 = vmatprep.subr.mxu0 0.0
    %656 = vmatpush2.xpose.msra.mxu0 0.0
    %657 = vmatprep.subr.mxu0 0.0
    %658 = vmatpush2.xpose.msra.mxu0 0.0
    %659 = vmatprep.subr.mxu0 0.0
    %660 = vmatpush2.xpose.msra.mxu0 0.0
    %661 = vmatprep.subr.mxu0 0.0
    %662 = vmatpush2.xpose.msra.mxu0 0.0
    %663 = vmatprep.subr.mxu0 0.0
    %664 = vmatpush2.xpose.msra.mxu0 0.0
    %665 = vmatprep.subr.mxu0 0.0
    %666 = vmatpush2.xpose.msra.mxu0 0.0
    %667 = vmatprep.subr.mxu0 0.0
    %668 = vmatpush2.xpose.msra.mxu0 0.0
    %669 = vmatprep.subr.mxu0 0.0
    %670 = vmatpush2.xpose.msra.mxu0 0.0
    %671 = vmatprep.subr.mxu0 0.0
    %672 = vmatpush2.xpose.msra.mxu0 0.0
    %673 = vmatprep.subr.mxu0 0.0
    %674 = vmatpush2.xpose.msra.mxu0 0.0
    %675 = vmatprep.subr.mxu0 0.0
    %676 = vmatpush2.xpose.msra.mxu0 0.0
    %677 = vmatprep.subr.mxu0 0.0
    %678 = vmatpush2.xpose.msra.mxu0 0.0
    %679 = vmatprep.subr.mxu0 0.0
    %680 = vmatpush2.xpose.msra.mxu0 0.0
    %681 = vmatprep.subr.mxu0 0.0
    %682 = vmatpush2.xpose.msra.mxu0 0.0
    %683 = vmatprep.subr.mxu0 0.0
    %684 = vmatpush2.xpose.msra.mxu0 0.0
    %685 = vmatprep.mubr.f32.mxu0 0.0
    %686 = vmatmul.mubr.f32.gmra.mxu0 %v568
    %v687 = vpop.f32.mrf.mxu0
    %v688 = vadd.f32 %v38, %v687
    %v689 = vpop.f32.mrf.mxu0
    %690 = vmatprep.mubr.f32.mxu0 0.0
    %691 = vmatmul.mubr.f32.gmra.mxu0 %v571
    %v692 = vpop.f32.mrf.mxu0
    %v693 = vadd.f32 %v39, %v692
    %v694 = vpop.f32.mrf.mxu0
    %695 = vdwg.mxu0
    %696 = vmax.xlane.f32.xlu0 %v688
    %v697 = vpop.xlane.xlu0 %696
    %698 = vmax.xlane.f32.xlu0 %v693
    %v699 = vpop.xlane.xlu0 %698
    %v700 = vsub.f32 %v688, %v697
    %v701 = vsub.f32 %v693, %v699
    %v702 = vmul.f32 %v700, 1.442695
    %v703 = vpow.pop %v702
    %v704 = vmul.f32 %v701, 1.442695
    %v705 = vpow.pop %v704
    %706 = vmatprep.subr.mxu0 0.0
    %707 = vmatpush1.msra.mxu0 %v566
    %708 = vmatprep.subr.mxu0 0.0
    %709 = vmatpush1.msra.mxu0 %v565
    %710 = vmatprep.subr.mxu0 0.0
    %711 = vmatpush1.msra.mxu0 %v564
    %712 = vmatprep.subr.mxu0 0.0
    %713 = vmatpush1.msra.mxu0 %v563
    %714 = vmatprep.subr.mxu0 0.0
    %715 = vmatpush1.msra.mxu0 %v562
    %716 = vmatprep.subr.mxu0 0.0
    %717 = vmatpush1.msra.mxu0 %v561
    %718 = vmatprep.subr.mxu0 0.0
    %719 = vmatpush1.msra.mxu0 %v560
    %720 = vmatprep.subr.mxu0 0.0
    %721 = vmatpush1.msra.mxu0 %v559
    %722 = vmatprep.subr.mxu0 0.0
    %723 = vmatpush1.msra.mxu0 %v558
    %724 = vmatprep.subr.mxu0 0.0
    %725 = vmatpush1.msra.mxu0 %v557
    %726 = vmatprep.subr.mxu0 0.0
    %727 = vmatpush1.msra.mxu0 %v556
    %728 = vmatprep.subr.mxu0 0.0
    %729 = vmatpush1.msra.mxu0 %v555
    %730 = vmatprep.subr.mxu0 0.0
    %731 = vmatpush1.msra.mxu0 %v554
    %732 = vmatprep.subr.mxu0 0.0
    %733 = vmatpush1.msra.mxu0 %v553
    %734 = vmatprep.subr.mxu0 0.0
    %735 = vmatpush1.msra.mxu0 %v552
    %736 = vmatprep.subr.mxu0 0.0
    %737 = vmatpush1.msra.mxu0 %v551
    %738 = vmatprep.subr.mxu0 0.0
    %739 = vmatpush2.msra.mxu0 0.0
    %740 = vmatprep.subr.mxu0 0.0
    %741 = vmatpush2.msra.mxu0 0.0
    %742 = vmatprep.subr.mxu0 0.0
    %743 = vmatpush2.msra.mxu0 0.0
    %744 = vmatprep.subr.mxu0 0.0
    %745 = vmatpush2.msra.mxu0 0.0
    %746 = vmatprep.subr.mxu0 0.0
    %747 = vmatpush2.msra.mxu0 0.0
    %748 = vmatprep.subr.mxu0 0.0
    %749 = vmatpush2.msra.mxu0 0.0
    %750 = vmatprep.subr.mxu0 0.0
    %751 = vmatpush2.msra.mxu0 0.0
    %752 = vmatprep.subr.mxu0 0.0
    %753 = vmatpush2.msra.mxu0 0.0
    %754 = vmatprep.subr.mxu0 0.0
    %755 = vmatpush2.msra.mxu0 0.0
    %756 = vmatprep.subr.mxu0 0.0
    %757 = vmatpush2.msra.mxu0 0.0
    %758 = vmatprep.subr.mxu0 0.0
    %759 = vmatpush2.msra.mxu0 0.0
    %760 = vmatprep.subr.mxu0 0.0
    %761 = vmatpush2.msra.mxu0 0.0
    %762 = vmatprep.subr.mxu0 0.0
    %763 = vmatpush2.msra.mxu0 0.0
    %764 = vmatprep.subr.mxu0 0.0
    %765 = vmatpush2.msra.mxu0 0.0
    %766 = vmatprep.subr.mxu0 0.0
    %767 = vmatpush2.msra.mxu0 0.0
    %768 = vmatprep.subr.mxu0 0.0
    %769 = vmatpush2.msra.mxu0 0.0
    %770 = vmatprep.mubr.f32.mxu0 0.0
    %771 = vmatmul.mubr.f32.gmra.mxu0 %v703
    %v772 = vpop.f32.mrf.mxu0
    %v773 = vadd.f32 0.0, %v772
    %v774 = vpop.f32.mrf.mxu0
    %775 = vmatprep.mubr.f32.mxu0 0.0
    %776 = vmatmul.mubr.f32.gmra.mxu0 %v705
    %v777 = vpop.f32.mrf.mxu0
    %v778 = vadd.f32 0.0, %v777
    %v779 = vpop.f32.mrf.mxu0
    %780 = vdwg.mxu0
    %781 = vmatprep.subr.mxu0 0.0
    %782 = vmatpush1.msra.mxu0 %v79
    %783 = vmatprep.subr.mxu0 0.0
    %784 = vmatpush1.msra.mxu0 %v78
    %785 = vmatprep.subr.mxu0 0.0
    %786 = vmatpush1.msra.mxu0 %v77
    %787 = vmatprep.subr.mxu0 0.0
    %788 = vmatpush1.msra.mxu0 %v76
    %789 = vmatprep.subr.mxu0 0.0
    %790 = vmatpush1.msra.mxu0 %v75
    %791 = vmatprep.subr.mxu0 0.0
    %792 = vmatpush1.msra.mxu0 %v74
    %793 = vmatprep.subr.mxu0 0.0
    %794 = vmatpush1.msra.mxu0 %v73
    %795 = vmatprep.subr.mxu0 0.0
    %796 = vmatpush1.msra.mxu0 %v72
    %797 = vmatprep.subr.mxu0 0.0
    %798 = vmatpush1.msra.mxu0 %v71
    %799 = vmatprep.subr.mxu0 0.0
    %800 = vmatpush1.msra.mxu0 %v70
    %801 = vmatprep.subr.mxu0 0.0
    %802 = vmatpush1.msra.mxu0 %v69
    %803 = vmatprep.subr.mxu0 0.0
    %804 = vmatpush1.msra.mxu0 %v68
    %805 = vmatprep.subr.mxu0 0.0
    %806 = vmatpush1.msra.mxu0 %v67
    %807 = vmatprep.subr.mxu0 0.0
    %808 = vmatpush1.msra.mxu0 %v66
    %809 = vmatprep.subr.mxu0 0.0
    %810 = vmatpush1.msra.mxu0 %v65
    %811 = vmatprep.subr.mxu0 0.0
    %812 = vmatpush1.msra.mxu0 %v64
    %813 = vmatprep.subr.mxu0 0.0
    %814 = vmatpush2.msra.mxu0 0.0
    %815 = vmatprep.subr.mxu0 0.0
    %816 = vmatpush2.msra.mxu0 0.0
    %817 = vmatprep.subr.mxu0 0.0
    %818 = vmatpush2.msra.mxu0 0.0
    %819 = vmatprep.subr.mxu0 0.0
    %820 = vmatpush2.msra.mxu0 0.0
    %821 = vmatprep.subr.mxu0 0.0
    %822 = vmatpush2.msra.mxu0 0.0
    %823 = vmatprep.subr.mxu0 0.0
    %824 = vmatpush2.msra.mxu0 0.0
    %825 = vmatprep.subr.mxu0 0.0
    %826 = vmatpush2.msra.mxu0 0.0
    %827 = vmatprep.subr.mxu0 0.0
    %828 = vmatpush2.msra.mxu0 0.0
    %829 = vmatprep.subr.mxu0 0.0
    %830 = vmatpush2.msra.mxu0 0.0
    %831 = vmatprep.subr.mxu0 0.0
    %832 = vmatpush2.msra.mxu0 0.0
    %833 = vmatprep.subr.mxu0 0.0
    %834 = vmatpush2.msra.mxu0 0.0
    %835 = vmatprep.subr.mxu0 0.0
    %836 = vmatpush2.msra.mxu0 0.0
    %837 = vmatprep.subr.mxu0 0.0
    %838 = vmatpush2.msra.mxu0 0.0
    %839 = vmatprep.subr.mxu0 0.0
    %840 = vmatpush2.msra.mxu0 0.0
    %841 = vmatprep.subr.mxu0 0.0
    %842 = vmatpush2.msra.mxu0 0.0
    %843 = vmatprep.subr.mxu0 0.0
    %844 = vmatpush2.msra.mxu0 0.0
    %845 = vmatprep.mubr.f32.mxu0 0.0
    %846 = vmatmul.mubr.f32.gmra.mxu0 %v703
    %v847 = vpop.f32.mrf.mxu0
    %v848 = vadd.f32 0.0, %v847
    %v849 = vpop.f32.mrf.mxu0
    %850 = vmatprep.mubr.f32.mxu0 0.0
    %851 = vmatmul.mubr.f32.gmra.mxu0 %v705
    %v852 = vpop.f32.mrf.mxu0
    %v853 = vadd.f32 0.0, %v852
    %v854 = vpop.f32.mrf.mxu0
    %855 = vdwg.mxu0
    %v856 = vrcp.pop %v848
    %v857 = vrcp.pop %v853
    %v858 = vmul.f32 %v773, %v856
    %v859 = vmul.f32 %v778, %v857
    %v861 = vsel %vm218, %v858, 0
    %v864 = vsel %vm218, %v859, 0
    %866 = vmatprep.subr.mxu0 0.0
    %867 = vmatpush1.msra.mxu0 0.0
    %868 = vmatprep.subr.mxu0 0.0
    %869 = vmatpush1.msra.mxu0 0.0
    %870 = vmatprep.subr.mxu0 0.0
    %871 = vmatpush1.msra.mxu0 0.0
    %872 = vmatprep.subr.mxu0 0.0
    %873 = vmatpush1.msra.mxu0 0.0
    %874 = vmatprep.subr.mxu0 0.0
    %875 = vmatpush1.msra.mxu0 0.0
    %876 = vmatprep.subr.mxu0 0.0
    %877 = vmatpush1.msra.mxu0 0.0
    %878 = vmatprep.subr.mxu0 0.0
    %879 = vmatpush1.msra.mxu0 0.0
    %880 = vmatprep.subr.mxu0 0.0
    %881 = vmatpush1.msra.mxu0 0.0
    %882 = vmatprep.subr.mxu0 0.0
    %883 = vmatpush1.msra.mxu0 0.0
    %884 = vmatprep.subr.mxu0 0.0
    %885 = vmatpush1.msra.mxu0 0.0
    %886 = vmatprep.subr.mxu0 0.0
    %887 = vmatpush1.msra.mxu0 0.0
    %888 = vmatprep.subr.mxu0 0.0
    %889 = vmatpush1.msra.mxu0 0.0
    %890 = vmatprep.subr.mxu0 0.0
    %891 = vmatpush1.msra.mxu0 %v63
    %892 = vmatprep.subr.mxu0 0.0
    %893 = vmatpush1.msra.mxu0 %v62
    %894 = vmatprep.subr.mxu0 0.0
    %895 = vmatpush1.msra.mxu0 %v61
    %896 = vmatprep.subr.mxu0 0.0
    %897 = vmatpush1.msra.mxu0 %v60
    %898 = vmatprep.subr.mxu0 0.0
    %899 = vmatpush2.msra.mxu0 0.0
    %900 = vmatprep.subr.mxu0 0.0
    %901 = vmatpush2.msra.mxu0 0.0
    %902 = vmatprep.subr.mxu0 0.0
    %903 = vmatpush2.msra.mxu0 0.0
    %904 = vmatprep.subr.mxu0 0.0
    %905 = vmatpush2.msra.mxu0 0.0
    %906 = vmatprep.subr.mxu0 0.0
    %907 = vmatpush2.msra.mxu0 0.0
    %908 = vmatprep.subr.mxu0 0.0
    %909 = vmatpush2.msra.mxu0 0.0
    %910 = vmatprep.subr.mxu0 0.0
    %911 = vmatpush2.msra.mxu0 0.0
    %912 = vmatprep.subr.mxu0 0.0
    %913 = vmatpush2.msra.mxu0 0.0
    %914 = vmatprep.subr.mxu0 0.0
    %915 = vmatpush2.msra.mxu0 0.0
    %916 = vmatprep.subr.mxu0 0.0
    %917 = vmatpush2.msra.mxu0 0.0
    %918 = vmatprep.subr.mxu0 0.0
    %919 = vmatpush2.msra.mxu0 0.0
    %920 = vmatprep.subr.mxu0 0.0
    %921 = vmatpush2.msra.mxu0 0.0
    %922 = vmatprep.subr.mxu0 0.0
    %923 = vmatpush2.msra.mxu0 0.0
    %924 = vmatprep.subr.mxu0 0.0
    %925 = vmatpush2.msra.mxu0 0.0
    %926 = vmatprep.subr.mxu0 0.0
    %927 = vmatpush2.msra.mxu0 0.0
    %928 = vmatprep.subr.mxu0 0.0
    %929 = vmatpush2.msra.mxu0 0.0
    %930 = vmatprep.mubr.f32.mxu0 0.0
    %931 = vmatmul.mubr.f32.gmra.mxu0 %v861
    %v932 = vpop.f32.mrf.mxu0
    %v933 = vadd.f32 0.0, %v932
    %v934 = vpop.f32.mrf.mxu0
    %935 = vmatprep.mubr.f32.mxu0 0.0
    %936 = vmatmul.mubr.f32.gmra.mxu0 %v864
    %v937 = vpop.f32.mrf.mxu0
    %v938 = vadd.f32 0.0, %v937
    %v939 = vpop.f32.mrf.mxu0
    %940 = vdwg.mxu0
    %v941 = vadd.f32 %v210, %v933
    %v942 = vadd.f32 %v215, %v938
    %v943 = vsel %vm218, %v941, 0.0
    %944 = vadd.xlane.f32.xlu0 %v943
    %v945 = vpop.xlane.xlu0 %944
    %v946 = vsel %vm218, %v942, 0.0
    %947 = vadd.xlane.f32.xlu0 %v946
    %v948 = vpop.xlane.xlu0 %947
    %v949 = vmul.f32 %v945, %v225
    %v950 = vmul.f32 %v948, %v225
    %v951 = vsub.f32 %v941, %v949
    %v952 = vsub.f32 %v942, %v950
    %v953 = vmul.f32 %v951, %v951
    %v954 = vmul.f32 %v952, %v952
    %v955 = vsel %vm218, %v953, 0.0
    %956 = vadd.xlane.f32.xlu0 %v955
    %v957 = vpop.xlane.xlu0 %956
    %v958 = vsel %vm218, %v954, 0.0
    %959 = vadd.xlane.f32.xlu0 %v958
    %v960 = vpop.xlane.xlu0 %959
    %v961 = vmul.f32 %v957, 0.032258064
    %v962 = vmul.f32 %v960, 0.032258064
    %v963 = vrsqrt.pop %v961
    %v964 = vmul.f32 %v961, %v963
    %vm965 = vcmp.eq.f32.partialorder %v961, inf
    %v966 = vsel %vm965, %v961, %v964
    %vm967 = vcmp.eq.f32.partialorder %v961, 0.0
    %v968 = vand.u32 %v961, 2147483648
    %v969 = vsel %vm967, %v968, %v966
    %v970 = vrsqrt.pop %v962
    %v971 = vmul.f32 %v962, %v970
    %vm972 = vcmp.eq.f32.partialorder %v962, inf
    %v973 = vsel %vm972, %v962, %v971
    %vm974 = vcmp.eq.f32.partialorder %v962, 0.0
    %v975 = vand.u32 %v962, 2147483648
    %v976 = vsel %vm974, %v975, %v973
    %v977 = vadd.f32 %v969, 1e-06
    %v978 = vadd.f32 %v976, 1e-06
    %v979 = vrcp.pop %v977
    %v980 = vrcp.pop %v978
    %v981 = vlaneseq
    %v982 = vshrl.u32 %v981, 7
    %v983 = vsub.s32 0, %v982
    %v984 = vrot.slane %v130, %v983
    %v985 = vmul.f32 %v984, %v951
    %v986 = vmul.f32 %v984, %v952
    %v987 = vmul.f32 %v985, %v979
    %v988 = vmul.f32 %v986, %v980
    %v989 = vlaneseq
    %v990 = vshrl.u32 %v989, 7
    %v991 = vsub.s32 0, %v990
    %v992 = vrot.slane %v131, %v991
    %v993 = vadd.f32 %v987, %v992
    %v994 = vadd.f32 %v988, %v992
    %v995 = vlaneseq
    %v996 = vshrl.u32 %v995, 7
    %v997 = vadd.s32 %v996, 8
    %vm998 = vcmp.lt.s32.totalorder %v996, 0
    %v999 = vsub.s32 0, %v996
    %v1000 = vsel %vm998, %v999, %v996
    %v1001 = vshrl.u32 %v1000, 3
    %v1002 = vand.u32 %v1000, 7
    %v1003 = vsub.s32 0, %v1002
    %v1004 = vsel %vm998, %v1003, %v1002
    %vm1005 = vcmp.lt.s32.totalorder %v997, 0
    %v1006 = vsub.s32 0, %v997
    %v1007 = vsel %vm1005, %v1006, %v997
    %v1008 = vshrl.u32 %v1007, 3
    %v1009 = vand.u32 %v1007, 7
    %v1010 = vsub.s32 0, %v1009
    %v1011 = vsel %vm1005, %v1010, %v1009
    %vm1012 = vcmp.ne.s32.totalorder %v1004, 0
    %vm1013 = vcmp.ne.s32.totalorder %v1011, 0
    %vm1014 = vcmp.lt.s32.totalorder %v1004, 0
    %vm1015 = vcmp.lt.s32.totalorder %v1011, 0
    %vm1016 = vmand %vm1014, %vm1012
    %vm1017 = vmand %vm1015, %vm1013
    %v1018 = vadd.s32 %v1004, 8
    %v1019 = vadd.s32 %v1011, 8
    %v1020 = vsel %vm1016, %v1018, %v1004
    %v1021 = vsel %vm1017, %v1019, %v1011
    %vm1022 = vcmp.ge.s32.totalorder %v1020, 2
    %vm1023 = vcmp.ge.s32.totalorder %v1021, 2
    %v1024 = vrot.slane %v993, 6
    %v1025 = vrot.slane %v994, 6
    %vm1026 = vcmp.lt.s32.totalorder %v996, 2
    %v1027 = vsel %vm1026, %v1024, %v1025
    %v1028 = vsel %vm1026, %v1025, %v1024
    %v1029 = vsel %vm1022, %v1028, 0.0
    %v1030 = vsel %vm1023, %v1027, 0.0
    %vm1031 = vcmp.ge.s32.totalorder %v1020, 1
    %vm1032 = vcmp.ge.s32.totalorder %v1021, 1
    %v1033 = vrot.slane %v993, 7
    %v1034 = vrot.slane %v994, 7
    %vm1035 = vcmp.lt.s32.totalorder %v996, 1
    %v1036 = vsel %vm1035, %v1033, %v1034
    %v1037 = vsel %vm1035, %v1034, %v1033
    %v1038 = vsel %vm1031, %v1037, 0.0
    %v1039 = vsel %vm1032, %v1036, 0.0
    %1042 = vrot.lane.b32.xlu0 %v1038, 32
    %v1043 = vpop.permute.xlu0 %1042
    %1044 = vrot.lane.b32.xlu0 %v1039, 32
    %v1045 = vpop.permute.xlu0 %1044
    %1050 = vrot.lane.b32.xlu0 %v993, 64
    %v1051 = vpop.permute.xlu0 %1050
    %1052 = vrot.lane.b32.xlu0 %v994, 64
    %v1053 = vpop.permute.xlu0 %1052
    %v1056 = vsel %vm218, %v1029, %v1043
    %v1057 = vsel %vm218, %v1030, %v1045
    %vm1058 = vcmask 523264
    %v1059 = vsel %vm1058, %v1056, %v1051
    %v1060 = vsel %vm1058, %v1057, %v1053
    %vm1061 = vcmask 785408
    %v1062 = vsel %vm1061, %v1059, 0.0
    %v1063 = vsel %vm1061, %v1060, 0.0
    %v1064 = vlaneseq
    %v1065 = vshrl.u32 %v1064, 7
    %v1066 = vsub.s32 0, %v1065
    %v1067 = vrot.slane %v135, %v1066
    %1068 = vmatprep.subr.mxu0 0.0
    %1069 = vmatpush1.msra.mxu0 %v95
    %1070 = vmatprep.subr.mxu0 0.0
    %1071 = vmatpush1.msra.mxu0 %v94
    %1072 = vmatprep.subr.mxu0 0.0
    %1073 = vmatpush1.msra.mxu0 %v93
    %1074 = vmatprep.subr.mxu0 0.0
    %1075 = vmatpush1.msra.mxu0 %v92
    %1076 = vmatprep.subr.mxu0 0.0
    %1077 = vmatpush1.msra.mxu0 %v91
    %1078 = vmatprep.subr.mxu0 0.0
    %1079 = vmatpush1.msra.mxu0 %v90
    %1080 = vmatprep.subr.mxu0 0.0
    %1081 = vmatpush1.msra.mxu0 %v89
    %1082 = vmatprep.subr.mxu0 0.0
    %1083 = vmatpush1.msra.mxu0 %v88
    %1084 = vmatprep.subr.mxu0 0.0
    %1085 = vmatpush1.msra.mxu0 %v87
    %1086 = vmatprep.subr.mxu0 0.0
    %1087 = vmatpush1.msra.mxu0 %v86
    %1088 = vmatprep.subr.mxu0 0.0
    %1089 = vmatpush1.msra.mxu0 %v85
    %1090 = vmatprep.subr.mxu0 0.0
    %1091 = vmatpush1.msra.mxu0 %v84
    %1092 = vmatprep.subr.mxu0 0.0
    %1093 = vmatpush1.msra.mxu0 %v83
    %1094 = vmatprep.subr.mxu0 0.0
    %1095 = vmatpush1.msra.mxu0 %v82
    %1096 = vmatprep.subr.mxu0 0.0
    %1097 = vmatpush1.msra.mxu0 %v81
    %1098 = vmatprep.subr.mxu0 0.0
    %1099 = vmatpush1.msra.mxu0 %v80
    %1100 = vmatprep.subr.mxu0 0.0
    %1101 = vmatpush2.msra.mxu0 0.0
    %1102 = vmatprep.subr.mxu0 0.0
    %1103 = vmatpush2.msra.mxu0 0.0
    %1104 = vmatprep.subr.mxu0 0.0
    %1105 = vmatpush2.msra.mxu0 0.0
    %1106 = vmatprep.subr.mxu0 0.0
    %1107 = vmatpush2.msra.mxu0 0.0
    %1108 = vmatprep.subr.mxu0 0.0
    %1109 = vmatpush2.msra.mxu0 0.0
    %1110 = vmatprep.subr.mxu0 0.0
    %1111 = vmatpush2.msra.mxu0 0.0
    %1112 = vmatprep.subr.mxu0 0.0
    %1113 = vmatpush2.msra.mxu0 0.0
    %1114 = vmatprep.subr.mxu0 0.0
    %1115 = vmatpush2.msra.mxu0 0.0
    %1116 = vmatprep.subr.mxu0 0.0
    %1117 = vmatpush2.msra.mxu0 0.0
    %1118 = vmatprep.subr.mxu0 0.0
    %1119 = vmatpush2.msra.mxu0 0.0
    %1120 = vmatprep.subr.mxu0 0.0
    %1121 = vmatpush2.msra.mxu0 0.0
    %1122 = vmatprep.subr.mxu0 0.0
    %1123 = vmatpush2.msra.mxu0 0.0
    %1124 = vmatprep.subr.mxu0 0.0
    %1125 = vmatpush2.msra.mxu0 0.0
    %1126 = vmatprep.subr.mxu0 0.0
    %1127 = vmatpush2.msra.mxu0 0.0
    %1128 = vmatprep.subr.mxu0 0.0
    %1129 = vmatpush2.msra.mxu0 0.0
    %1130 = vmatprep.subr.mxu0 0.0
    %1131 = vmatpush2.msra.mxu0 0.0
    %1132 = vmatprep.mubr.f32.mxu0 0.0
    %1133 = vmatmul.mubr.f32.gmra.mxu0 %v1062
    %v1134 = vpop.f32.mrf.mxu0
    %v1135 = vadd.f32 %v1067, %v1134
    %v1136 = vpop.f32.mrf.mxu0
    %1137 = vmatprep.mubr.f32.mxu0 0.0
    %1138 = vmatmul.mubr.f32.gmra.mxu0 %v1063
    %v1139 = vpop.f32.mrf.mxu0
    %v1140 = vadd.f32 %v1067, %v1139
    %v1141 = vpop.f32.mrf.mxu0
    %1142 = vdwg.mxu0
    %v1143 = vmax.f32 %v1135, 0.0
    %v1144 = vmax.f32 %v1140, 0.0
    %v1145 = vrot.slane %v1143, 6
    %v1146 = vrot.slane %v1144, 6
    %v1147 = vsel %vm1026, %v1145, %v1146
    %v1148 = vsel %vm1026, %v1146, %v1145
    %v1149 = vsel %vm1022, %v1148, 0.0
    %v1150 = vsel %vm1023, %v1147, 0.0
    %v1151 = vrot.slane %v1143, 7
    %v1152 = vrot.slane %v1144, 7
    %v1153 = vsel %vm1035, %v1151, %v1152
    %v1154 = vsel %vm1035, %v1152, %v1151
    %v1155 = vsel %vm1031, %v1154, 0.0
    %v1156 = vsel %vm1032, %v1153, 0.0
    %1159 = vrot.lane.b32.xlu0 %v1155, 64
    %v1160 = vpop.permute.xlu0 %1159
    %1161 = vrot.lane.b32.xlu0 %v1156, 64
    %v1162 = vpop.permute.xlu0 %1161
    %v1165 = vsel %vm1058, %v1149, %v1160
    %v1166 = vsel %vm1058, %v1150, %v1162
    %v1167 = vsel %vm1058, %v1143, 0.0
    %v1168 = vsel %vm1058, %v1144, 0.0
    %v1169 = vlaneseq
    %v1170 = vshrl.u32 %v1169, 7
    %v1171 = vsub.s32 0, %v1170
    %v1172 = vrot.slane %v134, %v1171
    %1173 = vmatprep.subr.mxu0 0.0
    %1174 = vmatpush1.msra.mxu0 %v111
    %1175 = vmatprep.subr.mxu0 0.0
    %1176 = vmatpush1.msra.mxu0 %v110
    %1177 = vmatprep.subr.mxu0 0.0
    %1178 = vmatpush1.msra.mxu0 %v109
    %1179 = vmatprep.subr.mxu0 0.0
    %1180 = vmatpush1.msra.mxu0 %v108
    %1181 = vmatprep.subr.mxu0 0.0
    %1182 = vmatpush1.msra.mxu0 %v107
    %1183 = vmatprep.subr.mxu0 0.0
    %1184 = vmatpush1.msra.mxu0 %v106
    %1185 = vmatprep.subr.mxu0 0.0
    %1186 = vmatpush1.msra.mxu0 %v105
    %1187 = vmatprep.subr.mxu0 0.0
    %1188 = vmatpush1.msra.mxu0 %v104
    %1189 = vmatprep.subr.mxu0 0.0
    %1190 = vmatpush1.msra.mxu0 %v103
    %1191 = vmatprep.subr.mxu0 0.0
    %1192 = vmatpush1.msra.mxu0 %v102
    %1193 = vmatprep.subr.mxu0 0.0
    %1194 = vmatpush1.msra.mxu0 %v101
    %1195 = vmatprep.subr.mxu0 0.0
    %1196 = vmatpush1.msra.mxu0 %v100
    %1197 = vmatprep.subr.mxu0 0.0
    %1198 = vmatpush1.msra.mxu0 %v99
    %1199 = vmatprep.subr.mxu0 0.0
    %1200 = vmatpush1.msra.mxu0 %v98
    %1201 = vmatprep.subr.mxu0 0.0
    %1202 = vmatpush1.msra.mxu0 %v97
    %1203 = vmatprep.subr.mxu0 0.0
    %1204 = vmatpush1.msra.mxu0 %v96
    %1205 = vmatprep.subr.mxu0 0.0
    %1206 = vmatpush2.msra.mxu0 %v127
    %1207 = vmatprep.subr.mxu0 0.0
    %1208 = vmatpush2.msra.mxu0 %v126
    %1209 = vmatprep.subr.mxu0 0.0
    %1210 = vmatpush2.msra.mxu0 %v125
    %1211 = vmatprep.subr.mxu0 0.0
    %1212 = vmatpush2.msra.mxu0 %v124
    %1213 = vmatprep.subr.mxu0 0.0
    %1214 = vmatpush2.msra.mxu0 %v123
    %1215 = vmatprep.subr.mxu0 0.0
    %1216 = vmatpush2.msra.mxu0 %v122
    %1217 = vmatprep.subr.mxu0 0.0
    %1218 = vmatpush2.msra.mxu0 %v121
    %1219 = vmatprep.subr.mxu0 0.0
    %1220 = vmatpush2.msra.mxu0 %v120
    %1221 = vmatprep.subr.mxu0 0.0
    %1222 = vmatpush2.msra.mxu0 %v119
    %1223 = vmatprep.subr.mxu0 0.0
    %1224 = vmatpush2.msra.mxu0 %v118
    %1225 = vmatprep.subr.mxu0 0.0
    %1226 = vmatpush2.msra.mxu0 %v117
    %1227 = vmatprep.subr.mxu0 0.0
    %1228 = vmatpush2.msra.mxu0 %v116
    %1229 = vmatprep.subr.mxu0 0.0
    %1230 = vmatpush2.msra.mxu0 %v115
    %1231 = vmatprep.subr.mxu0 0.0
    %1232 = vmatpush2.msra.mxu0 %v114
    %1233 = vmatprep.subr.mxu0 0.0
    %1234 = vmatpush2.msra.mxu0 %v113
    %1235 = vmatprep.subr.mxu0 0.0
    %1236 = vmatpush2.msra.mxu0 %v112
    %1237 = vmatprep.mubr.f32.mxu0 %v1167
    %1238 = vmatmul.mubr.f32.gmra.mxu0 %v1165
    %v1239 = vpop.f32.mrf.mxu0
    %v1240 = vadd.f32 %v1172, %v1239
    %v1241 = vpop.f32.mrf.mxu0
    %1242 = vmatprep.mubr.f32.mxu0 %v1168
    %1243 = vmatmul.mubr.f32.gmra.mxu0 %v1166
    %v1244 = vpop.f32.mrf.mxu0
    %v1245 = vadd.f32 %v1172, %v1244
    %v1246 = vpop.f32.mrf.mxu0
    %1247 = vdwg.mxu0
    %v1248 = vmax.f32 %v1240, 0.0
    %v1249 = vmax.f32 %v1245, 0.0
    %v1250 = vadd.f32 %v941, %v1248
    %v1251 = vadd.f32 %v942, %v1249
    %v1252 = vsel %vm218, %v1250, 0.0
    %1253 = vadd.xlane.f32.xlu0 %v1252
    %v1254 = vpop.xlane.xlu0 %1253
    %v1255 = vsel %vm218, %v1251, 0.0
    %1256 = vadd.xlane.f32.xlu0 %v1255
    %v1257 = vpop.xlane.xlu0 %1256
    %v1258 = vmul.f32 %v1254, %v225
    %v1259 = vmul.f32 %v1257, %v225
    %v1260 = vsub.f32 %v1250, %v1258
    %v1261 = vsub.f32 %v1251, %v1259
    %v1262 = vmul.f32 %v1260, %v1260
    %v1263 = vmul.f32 %v1261, %v1261
    %v1264 = vsel %vm218, %v1262, 0.0
    %1265 = vadd.xlane.f32.xlu0 %v1264
    %v1266 = vpop.xlane.xlu0 %1265
    %v1267 = vsel %vm218, %v1263, 0.0
    %1268 = vadd.xlane.f32.xlu0 %v1267
    %v1269 = vpop.xlane.xlu0 %1268
    %v1270 = vmul.f32 %v1266, 0.032258064
    %v1271 = vmul.f32 %v1269, 0.032258064
    %v1272 = vrsqrt.pop %v1270
    %v1273 = vmul.f32 %v1270, %v1272
    %vm1274 = vcmp.eq.f32.partialorder %v1270, inf
    %v1275 = vsel %vm1274, %v1270, %v1273
    %vm1276 = vcmp.eq.f32.partialorder %v1270, 0.0
    %v1277 = vand.u32 %v1270, 2147483648
    %v1278 = vsel %vm1276, %v1277, %v1275
    %v1279 = vrsqrt.pop %v1271
    %v1280 = vmul.f32 %v1271, %v1279
    %vm1281 = vcmp.eq.f32.partialorder %v1271, inf
    %v1282 = vsel %vm1281, %v1271, %v1280
    %vm1283 = vcmp.eq.f32.partialorder %v1271, 0.0
    %v1284 = vand.u32 %v1271, 2147483648
    %v1285 = vsel %vm1283, %v1284, %v1282
    %v1286 = vadd.f32 %v1278, 1e-06
    %v1287 = vadd.f32 %v1285, 1e-06
    %v1288 = vrcp.pop %v1286
    %v1289 = vrcp.pop %v1287
    %v1290 = vlaneseq
    %v1291 = vshrl.u32 %v1290, 7
    %v1292 = vsub.s32 0, %v1291
    %v1293 = vrot.slane %v132, %v1292
    %v1294 = vmul.f32 %v1293, %v1260
    %v1295 = vmul.f32 %v1293, %v1261
    %v1296 = vmul.f32 %v1294, %v1288
    %v1297 = vmul.f32 %v1295, %v1289
    %v1298 = vlaneseq
    %v1299 = vshrl.u32 %v1298, 7
    %v1300 = vsub.s32 0, %v1299
    %v1301 = vrot.slane %v133, %v1300
    %v1302 = vadd.f32 %v1296, %v1301
    %v1303 = vadd.f32 %v1297, %v1301
    %1304 = vst.msk [vmem:[#allocation5] sm:$0xff] %vm218, %v1302
    %1305 = vst.msk [vmem:[#allocation5 + $0x8] sm:$0xff] %vm218, %v1303
    // Predicated region
    $region22: #{complex_res_decoder.1} parent=1 // pred_check
      _
    $region23: #{complex_res_decoder.1} parent=1 // pred_check_branch
      %1307 = sbr.rel (0) target = $region25
    $region24: #{complex_res_decoder.1} parent=1 // pred_region
      %s1309 = ssub.s32 256, 256
      %1310 = vsyncadd [#allocation4], %s1309
      %s1311 = sshll.u32 [#allocation5], 4
      %s1312 = int_to_ptr.vmem [resolvable:$true] %s1311
      %1317 = dma.vmem_to_hbm [thread:$0]  %s1312, 256, %s4, [#allocation4], 128, 128, 8
    $region25: #{complex_res_decoder.1} parent=1 // pred_fallthru
      _
    // Predicated region
    $region26: #{complex_res_decoder.1} parent=1 // pred_check
      _
    $region27: #{complex_res_decoder.1} parent=1 // pred_check_branch
      %1319 = sbr.rel (0) target = $region29
    $region28: #{complex_res_decoder.1} parent=1 // pred_region
      %1320 = dma.done [#allocation4], 256
    $region29: #{complex_res_decoder.1} parent=1 // pred_fallthru
      _
    %1321 = vsyncpa [#allocation3], 1
    %1322 = vsyncpa [#allocation4], 1

</llo_original>
